<compile_context>
chip_gen: v7x
topology: tpu7x:2x2x1
jax: 0.10.0
libtpu: 0.0.40
codegen_flags: <defaults>
</compile_context>

<pallas_src>
import jax
import jax.numpy as jnp
from jax.experimental import pallas as pl
from jax.experimental.pallas import tpu as pltpu


def _make_clip_loss_kernel(n, ni, nj, tm, tn):
    inv_n = 1.0 / float(n)

    def kernel(scale_ref, img_ref, txt_ref, loss_ref,
               m_row, l_row, m_col, l_col, acc):
        i = pl.program_id(0)   # image row block (outer, resident operand)
        j = pl.program_id(1)   # text col block (inner / reduction, streamed)

        scale = scale_ref[0]

        # (tm, D) x (tn, D) contracted over the shared D (lane) dim -> (tm, tn).
        logits = scale * jax.lax.dot_general(
            img_ref[...], txt_ref[...],
            dimension_numbers=(((1,), (1,)), ((), ())),
            preferred_element_type=jnp.float32,
        )

        # ---- accumulator init (first grid step only) ----
        @pl.when((i == 0) & (j == 0))
        def _():
            acc[...] = jnp.zeros_like(acc)

        # ---- row-wise online LSE (cross-entropy of logits_per_image) ----
        row_max = jnp.max(logits, axis=1, keepdims=True)                   # (tm, 1)

        @pl.when(j == 0)
        def _():
            m_row[...] = row_max
            l_row[...] = jnp.sum(jnp.exp(logits - row_max), axis=1, keepdims=True)

        @pl.when(j > 0)
        def _():
            m_new = jnp.maximum(m_row[...], row_max)
            l_row[...] = (l_row[...] * jnp.exp(m_row[...] - m_new)
                          + jnp.sum(jnp.exp(logits - m_new), axis=1, keepdims=True))
            m_row[...] = m_new

        # ---- column-wise online LSE (cross-entropy of logits_per_text = L.T) ----
        col_max = jnp.max(logits, axis=0, keepdims=True)                   # (1, tn)

        @pl.when(i == 0)
        def _():
            m_col[j] = col_max
            l_col[j] = jnp.sum(jnp.exp(logits - col_max), axis=0, keepdims=True)

        @pl.when(i > 0)
        def _():
            m_old = m_col[j]
            m_new = jnp.maximum(m_old, col_max)
            l_col[j] = (l_col[j] * jnp.exp(m_old - m_new)
                        + jnp.sum(jnp.exp(logits - m_new), axis=0, keepdims=True))
            m_col[j] = m_new

        # ---- diagonal targets: only tiles on the diagonal (tm == tn) ----
        @pl.when(i == j)
        def _():
            rr = jax.lax.broadcasted_iota(jnp.int32, (tm, tn), 0)
            cc = jax.lax.broadcasted_iota(jnp.int32, (tm, tn), 1)
            diag = jnp.sum(jnp.where(rr == cc, logits, 0.0), keepdims=True)  # (1,1)
            acc[...] = acc[...] - diag     # subtracted once per CE, times 0.5 each

        # ---- finalize this row block's LSE sum (last column block) ----
        @pl.when(j == nj - 1)
        def _():
            row_lse = m_row[...] + jnp.log(l_row[...])                      # (tm, 1)
            acc[...] = acc[...] + 0.5 * jnp.sum(row_lse, keepdims=True)

        # ---- finalize this column block's LSE sum (last row block) ----
        @pl.when(i == ni - 1)
        def _():
            col_lse = m_col[j] + jnp.log(l_col[j])                          # (1, tn)
            acc[...] = acc[...] + 0.5 * jnp.sum(col_lse, keepdims=True)

        # ---- write the scalar loss exactly once, at the final grid step ----
        @pl.when((i == ni - 1) & (j == nj - 1))
        def _():
            loss_ref[...] = acc[...] * jnp.float32(inv_n)

    return kernel


def clip_loss(image_features, text_features, logit_scale, *, block_n=256):
    """ClipLoss.forward for world_size == 1.  Returns scalar f32 loss."""
    n, d = image_features.shape
    assert text_features.shape == (n, d)

    # Square logits tile (tm == tn), MXU / (8,128)-friendly, dividing N.
    tile = min(block_n, n)
    while tile > 8 and n % tile != 0:
        tile //= 2
    if n % tile != 0:
        tile = n                     # single-tile fallback (block == full array dim)
    tm = tn = tile
    ni, nj = n // tm, n // tn

    scale = jnp.asarray(logit_scale, dtype=jnp.float32).reshape((1,))
    kernel = _make_clip_loss_kernel(n, ni, nj, tm, tn)

    out = pl.pallas_call(
        kernel,
        out_shape=jax.ShapeDtypeStruct((1, 1), jnp.float32),
        grid=(ni, nj),
        in_specs=[
            pl.BlockSpec((1,), lambda i, j: (0,), memory_space=pltpu.SMEM),  # scale
            pl.BlockSpec((tm, d), lambda i, j: (i, 0)),   # image rows: resident per i
            pl.BlockSpec((tn, d), lambda i, j: (j, 0)),   # text rows: streamed over j
        ],
        out_specs=pl.BlockSpec((1, 1), lambda i, j: (0, 0)),
        scratch_shapes=[
            pltpu.VMEM((tm, 1), jnp.float32),        # m_row
            pltpu.VMEM((tm, 1), jnp.float32),        # l_row
            pltpu.VMEM((nj, 1, tn), jnp.float32),    # m_col (persists across rows)
            pltpu.VMEM((nj, 1, tn), jnp.float32),    # l_col
            pltpu.VMEM((1, 1), jnp.float32),         # loss accumulator
        ],
        compiler_params=pltpu.CompilerParams(
            dimension_semantics=("arbitrary", "arbitrary")),
    )(scale, image_features, text_features)
    return out[0, 0]


def _clip_loss_ref(image_features, text_features, logit_scale):
    """Pure-JAX reference for validation."""
    li = logit_scale * (image_features.astype(jnp.float32)
                        @ text_features.astype(jnp.float32).T)
    lt = logit_scale * (text_features.astype(jnp.float32)
                        @ image_features.astype(jnp.float32).T)
    labels = jnp.arange(li.shape[0])

    def ce(logits):
        logp = jax.nn.log_softmax(logits, axis=-1)
        return -jnp.mean(logp[jnp.arange(logits.shape[0]), labels])

    return 0.5 * (ce(li) + ce(lt))


if __name__ == "__main__":
    key = jax.random.PRNGKey(0)
    k1, k2 = jax.random.split(key)

    N, D = 256, 64   # small synthetic batch / embedding dim; grid = (2, 2) at tile 128
    image_features = jax.random.normal(k1, (N, D), dtype=jnp.float32)
    text_features = jax.random.normal(k2, (N, D), dtype=jnp.float32)
    # CLIP uses unit-norm embeddings
    image_features = image_features / jnp.linalg.norm(image_features, axis=-1, keepdims=True)
    text_features = text_features / jnp.linalg.norm(text_features, axis=-1, keepdims=True)
    # open_clip uses logit_scale = exp(learnable); init value exp(log(1/0.07))
    logit_scale = jnp.float32(1.0 / 0.07)

    loss = clip_loss(image_features, text_features, logit_scale, block_n=128)
    jax.block_until_ready(loss)

    ref = _clip_loss_ref(image_features, text_features, logit_scale)
    assert jnp.allclose(loss, ref, rtol=1e-3, atol=1e-3), (loss, ref)

    print("KERNEL_OK")
</pallas_src>

<mosaic_0001>
module attributes {stable_mosaic.version = 11 : i64} {
  func.func @kernel(%arg0: i32, %arg1: i32, %arg2: memref<1xf32, #tpu.memory_space<smem>>, %arg3: memref<128x64xf32, #tpu.memory_space<vmem>>, %arg4: memref<128x64xf32, #tpu.memory_space<vmem>>, %arg5: memref<1x1xf32, #tpu.memory_space<vmem>>, %arg6: memref<128x1xf32, #tpu.memory_space<vmem>>, %arg7: memref<128x1xf32, #tpu.memory_space<vmem>>, %arg8: memref<2x1x128xf32, #tpu.memory_space<vmem>>, %arg9: memref<2x1x128xf32, #tpu.memory_space<vmem>>, %arg10: memref<1x1xf32, #tpu.memory_space<vmem>>) attributes {dimension_semantics = [#tpu.dimension_semantics<arbitrary>, #tpu.dimension_semantics<arbitrary>], iteration_bounds = array<i64: 2, 2>, scalar_prefetch = 0 : i64, scratch_operands = 5 : i64, tpu.core_type = #tpu.core_type<tc>, window_params = [{transform_indices = @transform_0, window_bounds = array<i64: 1>}, {transform_indices = @transform_1, window_bounds = array<i64: 128, 64>}, {transform_indices = @transform_2, window_bounds = array<i64: 128, 64>}, {pipeline_mode = #tpu.pipeline_mode<synchronous>, transform_indices = @transform_3, window_bounds = array<i64: 1, 1>}]} {
    %c0 = arith.constant 0 : index
    %0 = memref.load %arg2[%c0] : memref<1xf32, #tpu.memory_space<smem>>
    %c0_0 = arith.constant 0 : index
    %c0_1 = arith.constant 0 : index
    %1 = vector.load %arg3[%c0_0, %c0_1] : memref<128x64xf32, #tpu.memory_space<vmem>>, vector<128x64xf32>
    %c0_2 = arith.constant 0 : index
    %c0_3 = arith.constant 0 : index
    %2 = vector.load %arg4[%c0_2, %c0_3] : memref<128x64xf32, #tpu.memory_space<vmem>>, vector<128x64xf32>
    %cst = arith.constant dense<0.000000e+00> : vector<128x128xf32>
    %3 = tpu.matmul %1, %2, %cst {dimension_numbers = #tpu.dot_dimension_numbers<[1], [1], [0], [0], [0, 0, 1, 0], [], []>} : vector<128x64xf32>, vector<128x64xf32>, vector<128x128xf32> -> vector<128x128xf32>
    %4 = vector.broadcast %0 : f32 to vector<128x128xf32>
    %5 = arith.mulf %4, %3 : vector<128x128xf32>
    %c0_i32 = arith.constant 0 : i32
    %6 = arith.cmpi eq, %arg0, %c0_i32 : i32
    %c0_i32_4 = arith.constant 0 : i32
    %7 = arith.cmpi eq, %arg1, %c0_i32_4 : i32
    %8 = arith.andi %6, %7 : i1
    %9 = arith.extui %8 : i1 to i32
    %c0_i32_5 = arith.constant 0 : i32
    %10 = arith.cmpi ne, %9, %c0_i32_5 : i32
    scf.if %10 {
      %cst_23 = arith.constant 0.000000e+00 : f32
      %41 = vector.broadcast %cst_23 : f32 to vector<1x1xf32>
      %c0_24 = arith.constant 0 : index
      %c0_25 = arith.constant 0 : index
      %42 = vector.load %arg10[%c0_24, %c0_25] : memref<1x1xf32, #tpu.memory_space<vmem>>, vector<1x1xf32>
      tpu.vector_store %arg10[%c0_24, %c0_25], %41 {strides = array<i32>} : memref<1x1xf32, #tpu.memory_space<vmem>>, vector<1x1xf32>,
    } else {
    }
    %cst_6 = arith.constant dense<0xFF800000> : vector<128xf32>
    %11 = vector.multi_reduction <maximumf>, %5, %cst_6 [1] : vector<128x128xf32> to vector<128xf32>
    %12 = vector.shape_cast %11 : vector<128xf32> to vector<128x1xf32>
    %c0_i32_7 = arith.constant 0 : i32
    %13 = arith.cmpi eq, %arg1, %c0_i32_7 : i32
    %14 = arith.extui %13 : i1 to i32
    %c0_i32_8 = arith.constant 0 : i32
    %15 = arith.cmpi ne, %14, %c0_i32_8 : i32
    scf.if %15 {
      %c0_23 = arith.constant 0 : index
      %c0_24 = arith.constant 0 : index
      %41 = vector.load %arg6[%c0_23, %c0_24] : memref<128x1xf32, #tpu.memory_space<vmem>>, vector<128x1xf32>
      tpu.vector_store %arg6[%c0_23, %c0_24], %12 {strides = array<i32>} : memref<128x1xf32, #tpu.memory_space<vmem>>, vector<128x1xf32>,
      %42 = vector.broadcast %12 : vector<128x1xf32> to vector<128x128xf32>
      %43 = arith.subf %5, %42 : vector<128x128xf32>
      %44 = math.exp %43 : vector<128x128xf32>
      %cst_25 = arith.constant dense<0.000000e+00> : vector<128xf32>
      %45 = vector.multi_reduction <add>, %44, %cst_25 [1] : vector<128x128xf32> to vector<128xf32>
      %46 = vector.shape_cast %45 : vector<128xf32> to vector<128x1xf32>
      %c0_26 = arith.constant 0 : index
      %c0_27 = arith.constant 0 : index
      %47 = vector.load %arg7[%c0_26, %c0_27] : memref<128x1xf32, #tpu.memory_space<vmem>>, vector<128x1xf32>
      tpu.vector_store %arg7[%c0_26, %c0_27], %46 {strides = array<i32>} : memref<128x1xf32, #tpu.memory_space<vmem>>, vector<128x1xf32>,
    } else {
    }
    %c0_i32_9 = arith.constant 0 : i32
    %16 = arith.cmpi sgt, %arg1, %c0_i32_9 : i32
    %17 = arith.extui %16 : i1 to i32
    %c0_i32_10 = arith.constant 0 : i32
    %18 = arith.cmpi ne, %17, %c0_i32_10 : i32
    scf.if %18 {
      %c0_23 = arith.constant 0 : index
      %c0_24 = arith.constant 0 : index
      %41 = vector.load %arg6[%c0_23, %c0_24] : memref<128x1xf32, #tpu.memory_space<vmem>>, vector<128x1xf32>
      %42 = arith.maximumf %41, %12 : vector<128x1xf32>
      %c0_25 = arith.constant 0 : index
      %c0_26 = arith.constant 0 : index
      %43 = vector.load %arg7[%c0_25, %c0_26] : memref<128x1xf32, #tpu.memory_space<vmem>>, vector<128x1xf32>
      %c0_27 = arith.constant 0 : index
      %c0_28 = arith.constant 0 : index
      %44 = vector.load %arg6[%c0_27, %c0_28] : memref<128x1xf32, #tpu.memory_space<vmem>>, vector<128x1xf32>
      %45 = arith.subf %44, %42 : vector<128x1xf32>
      %46 = math.exp %45 : vector<128x1xf32>
      %47 = arith.mulf %43, %46 : vector<128x1xf32>
      %48 = vector.broadcast %42 : vector<128x1xf32> to vector<128x128xf32>
      %49 = arith.subf %5, %48 : vector<128x128xf32>
      %50 = math.exp %49 : vector<128x128xf32>
      %cst_29 = arith.constant dense<0.000000e+00> : vector<128xf32>
      %51 = vector.multi_reduction <add>, %50, %cst_29 [1] : vector<128x128xf32> to vector<128xf32>
      %52 = vector.shape_cast %51 : vector<128xf32> to vector<128x1xf32>
      %53 = arith.addf %47, %52 : vector<128x1xf32>
      %c0_30 = arith.constant 0 : index
      %c0_31 = arith.constant 0 : index
      %54 = vector.load %arg7[%c0_30, %c0_31] : memref<128x1xf32, #tpu.memory_space<vmem>>, vector<128x1xf32>
      tpu.vector_store %arg7[%c0_30, %c0_31], %53 {strides = array<i32>} : memref<128x1xf32, #tpu.memory_space<vmem>>, vector<128x1xf32>,
      %c0_32 = arith.constant 0 : index
      %c0_33 = arith.constant 0 : index
      %55 = vector.load %arg6[%c0_32, %c0_33] : memref<128x1xf32, #tpu.memory_space<vmem>>, vector<128x1xf32>
      tpu.vector_store %arg6[%c0_32, %c0_33], %42 {strides = array<i32>} : memref<128x1xf32, #tpu.memory_space<vmem>>, vector<128x1xf32>,
    } else {
    }
    %cst_11 = arith.constant dense<0xFF800000> : vector<128xf32>
    %19 = vector.multi_reduction <maximumf>, %5, %cst_11 [0] : vector<128x128xf32> to vector<128xf32>
    %20 = vector.shape_cast %19 : vector<128xf32> to vector<1x128xf32>
    %c0_i32_12 = arith.constant 0 : i32
    %21 = arith.cmpi eq, %arg0, %c0_i32_12 : i32
    %22 = arith.extui %21 : i1 to i32
    %c0_i32_13 = arith.constant 0 : i32
    %23 = arith.cmpi ne, %22, %c0_i32_13 : i32
    scf.if %23 {
      %41 = arith.index_cast %arg1 : i32 to index
      %c0_23 = arith.constant 0 : index
      %c0_24 = arith.constant 0 : index
      %42 = vector.load %arg8[%41, %c0_23, %c0_24] : memref<2x1x128xf32, #tpu.memory_space<vmem>>, vector<1x1x128xf32>
      %43 = vector.shape_cast %42 : vector<1x1x128xf32> to vector<1x128xf32>
      %44 = vector.shape_cast %20 : vector<1x128xf32> to vector<1x1x128xf32>
      tpu.vector_store %arg8[%41, %c0_23, %c0_24], %44 {strides = array<i32>} : memref<2x1x128xf32, #tpu.memory_space<vmem>>, vector<1x1x128xf32>,
      %45 = vector.broadcast %20 : vector<1x128xf32> to vector<128x128xf32>
      %46 = arith.subf %5, %45 : vector<128x128xf32>
      %47 = math.exp %46 : vector<128x128xf32>
      %cst_25 = arith.constant dense<0.000000e+00> : vector<128xf32>
      %48 = vector.multi_reduction <add>, %47, %cst_25 [0] : vector<128x128xf32> to vector<128xf32>
      %49 = vector.shape_cast %48 : vector<128xf32> to vector<1x128xf32>
      %50 = arith.index_cast %arg1 : i32 to index
      %c0_26 = arith.constant 0 : index
      %c0_27 = arith.constant 0 : index
      %51 = vector.load %arg9[%50, %c0_26, %c0_27] : memref<2x1x128xf32, #tpu.memory_space<vmem>>, vector<1x1x128xf32>
      %52 = vector.shape_cast %51 : vector<1x1x128xf32> to vector<1x128xf32>
      %53 = vector.shape_cast %49 : vector<1x128xf32> to vector<1x1x128xf32>
      tpu.vector_store %arg9[%50, %c0_26, %c0_27], %53 {strides = array<i32>} : memref<2x1x128xf32, #tpu.memory_space<vmem>>, vector<1x1x128xf32>,
    } else {
    }
    %c0_i32_14 = arith.constant 0 : i32
    %24 = arith.cmpi sgt, %arg0, %c0_i32_14 : i32
    %25 = arith.extui %24 : i1 to i32
    %c0_i32_15 = arith.constant 0 : i32
    %26 = arith.cmpi ne, %25, %c0_i32_15 : i32
    scf.if %26 {
      %41 = arith.index_cast %arg1 : i32 to index
      %c0_23 = arith.constant 0 : index
      %c0_24 = arith.constant 0 : index
      %42 = vector.load %arg8[%41, %c0_23, %c0_24] : memref<2x1x128xf32, #tpu.memory_space<vmem>>, vector<1x1x128xf32>
      %43 = vector.shape_cast %42 : vector<1x1x128xf32> to vector<1x128xf32>
      %44 = arith.maximumf %43, %20 : vector<1x128xf32>
      %45 = arith.index_cast %arg1 : i32 to index
      %c0_25 = arith.constant 0 : index
      %c0_26 = arith.constant 0 : index
      %46 = vector.load %arg9[%45, %c0_25, %c0_26] : memref<2x1x128xf32, #tpu.memory_space<vmem>>, vector<1x1x128xf32>
      %47 = vector.shape_cast %46 : vector<1x1x128xf32> to vector<1x128xf32>
      %48 = arith.subf %43, %44 : vector<1x128xf32>
      %49 = math.exp %48 : vector<1x128xf32>
      %50 = arith.mulf %47, %49 : vector<1x128xf32>
      %51 = vector.broadcast %44 : vector<1x128xf32> to vector<128x128xf32>
      %52 = arith.subf %5, %51 : vector<128x128xf32>
      %53 = math.exp %52 : vector<128x128xf32>
      %cst_27 = arith.constant dense<0.000000e+00> : vector<128xf32>
      %54 = vector.multi_reduction <add>, %53, %cst_27 [0] : vector<128x128xf32> to vector<128xf32>
      %55 = vector.shape_cast %54 : vector<128xf32> to vector<1x128xf32>
      %56 = arith.addf %50, %55 : vector<1x128xf32>
      %57 = arith.index_cast %arg1 : i32 to index
      %c0_28 = arith.constant 0 : index
      %c0_29 = arith.constant 0 : index
      %58 = vector.load %arg9[%57, %c0_28, %c0_29] : memref<2x1x128xf32, #tpu.memory_space<vmem>>, vector<1x1x128xf32>
      %59 = vector.shape_cast %58 : vector<1x1x128xf32> to vector<1x128xf32>
      %60 = vector.shape_cast %56 : vector<1x128xf32> to vector<1x1x128xf32>
      tpu.vector_store %arg9[%57, %c0_28, %c0_29], %60 {strides = array<i32>} : memref<2x1x128xf32, #tpu.memory_space<vmem>>, vector<1x1x128xf32>,
      %61 = arith.index_cast %arg1 : i32 to index
      %c0_30 = arith.constant 0 : index
      %c0_31 = arith.constant 0 : index
      %62 = vector.load %arg8[%61, %c0_30, %c0_31] : memref<2x1x128xf32, #tpu.memory_space<vmem>>, vector<1x1x128xf32>
      %63 = vector.shape_cast %62 : vector<1x1x128xf32> to vector<1x128xf32>
      %64 = vector.shape_cast %44 : vector<1x128xf32> to vector<1x1x128xf32>
      tpu.vector_store %arg8[%61, %c0_30, %c0_31], %64 {strides = array<i32>} : memref<2x1x128xf32, #tpu.memory_space<vmem>>, vector<1x1x128xf32>,
    } else {
    }
    %27 = arith.cmpi eq, %arg0, %arg1 : i32
    %28 = arith.extui %27 : i1 to i32
    %c0_i32_16 = arith.constant 0 : i32
    %29 = arith.cmpi ne, %28, %c0_i32_16 : i32
    scf.if %29 {
      %41 = tpu.iota {dimensions = array<i32: 0>} : vector<128x128xi32>
      %42 = tpu.iota {dimensions = array<i32: 1>} : vector<128x128xi32>
      %43 = arith.cmpi eq, %41, %42 : vector<128x128xi32>
      %cst_23 = arith.constant 0.000000e+00 : f32
      %44 = vector.broadcast %cst_23 : f32 to vector<128x128xf32>
      %45 = arith.select %43, %5, %44 : vector<128x128xi1>, vector<128x128xf32>
      %46 = vector.shape_cast %45 : vector<128x128xf32> to vector<1x128x128xf32>
      %cst_24 = arith.constant dense<0.000000e+00> : vector<1xf32>
      %47 = vector.multi_reduction <add>, %46, %cst_24 [1, 2] : vector<1x128x128xf32> to vector<1xf32>
      %48 = vector.shape_cast %47 : vector<1xf32> to vector<1x1x1xf32>
      %49 = vector.extract %48[0, 0, 0] : f32 from vector<1x1x1xf32>
      %50 = vector.broadcast %49 : f32 to vector<1x1xf32>
      %c0_25 = arith.constant 0 : index
      %c0_26 = arith.constant 0 : index
      %51 = vector.load %arg10[%c0_25, %c0_26] : memref<1x1xf32, #tpu.memory_space<vmem>>, vector<1x1xf32>
      %52 = arith.subf %51, %50 : vector<1x1xf32>
      %c0_27 = arith.constant 0 : index
      %c0_28 = arith.constant 0 : index
      %53 = vector.load %arg10[%c0_27, %c0_28] : memref<1x1xf32, #tpu.memory_space<vmem>>, vector<1x1xf32>
      tpu.vector_store %arg10[%c0_27, %c0_28], %52 {strides = array<i32>} : memref<1x1xf32, #tpu.memory_space<vmem>>, vector<1x1xf32>,
    } else {
    }
    %c1_i32 = arith.constant 1 : i32
    %30 = arith.cmpi eq, %arg1, %c1_i32 : i32
    %31 = arith.extui %30 : i1 to i32
    %c0_i32_17 = arith.constant 0 : i32
    %32 = arith.cmpi ne, %31, %c0_i32_17 : i32
    scf.if %32 {
      %c0_23 = arith.constant 0 : index
      %c0_24 = arith.constant 0 : index
      %41 = vector.load %arg6[%c0_23, %c0_24] : memref<128x1xf32, #tpu.memory_space<vmem>>, vector<128x1xf32>
      %c0_25 = arith.constant 0 : index
      %c0_26 = arith.constant 0 : index
      %42 = vector.load %arg7[%c0_25, %c0_26] : memref<128x1xf32, #tpu.memory_space<vmem>>, vector<128x1xf32>
      %43 = math.log %42 : vector<128x1xf32>
      %44 = arith.addf %41, %43 : vector<128x1xf32>
      %c0_27 = arith.constant 0 : index
      %c0_28 = arith.constant 0 : index
      %45 = vector.load %arg10[%c0_27, %c0_28] : memref<1x1xf32, #tpu.memory_space<vmem>>, vector<1x1xf32>
      %46 = vector.shape_cast %44 : vector<128x1xf32> to vector<1x128x1xf32>
      %cst_29 = arith.constant dense<0.000000e+00> : vector<1xf32>
      %47 = vector.multi_reduction <add>, %46, %cst_29 [1, 2] : vector<1x128x1xf32> to vector<1xf32>
      %48 = vector.shape_cast %47 : vector<1xf32> to vector<1x1x1xf32>
      %49 = vector.extract %48[0, 0, 0] : f32 from vector<1x1x1xf32>
      %50 = vector.broadcast %49 : f32 to vector<1x1xf32>
      %cst_30 = arith.constant 5.000000e-01 : f32
      %51 = vector.broadcast %cst_30 : f32 to vector<1x1xf32>
      %52 = arith.mulf %51, %50 : vector<1x1xf32>
      %53 = arith.addf %45, %52 : vector<1x1xf32>
      %c0_31 = arith.constant 0 : index
      %c0_32 = arith.constant 0 : index
      %54 = vector.load %arg10[%c0_31, %c0_32] : memref<1x1xf32, #tpu.memory_space<vmem>>, vector<1x1xf32>
      tpu.vector_store %arg10[%c0_31, %c0_32], %53 {strides = array<i32>} : memref<1x1xf32, #tpu.memory_space<vmem>>, vector<1x1xf32>,
    } else {
    }
    %c1_i32_18 = arith.constant 1 : i32
    %33 = arith.cmpi eq, %arg0, %c1_i32_18 : i32
    %34 = arith.extui %33 : i1 to i32
    %c0_i32_19 = arith.constant 0 : i32
    %35 = arith.cmpi ne, %34, %c0_i32_19 : i32
    scf.if %35 {
      %41 = arith.index_cast %arg1 : i32 to index
      %c0_23 = arith.constant 0 : index
      %c0_24 = arith.constant 0 : index
      %42 = vector.load %arg8[%41, %c0_23, %c0_24] : memref<2x1x128xf32, #tpu.memory_space<vmem>>, vector<1x1x128xf32>
      %43 = vector.shape_cast %42 : vector<1x1x128xf32> to vector<1x128xf32>
      %44 = arith.index_cast %arg1 : i32 to index
      %c0_25 = arith.constant 0 : index
      %c0_26 = arith.constant 0 : index
      %45 = vector.load %arg9[%44, %c0_25, %c0_26] : memref<2x1x128xf32, #tpu.memory_space<vmem>>, vector<1x1x128xf32>
      %46 = vector.shape_cast %45 : vector<1x1x128xf32> to vector<1x128xf32>
      %47 = math.log %46 : vector<1x128xf32>
      %48 = arith.addf %43, %47 : vector<1x128xf32>
      %c0_27 = arith.constant 0 : index
      %c0_28 = arith.constant 0 : index
      %49 = vector.load %arg10[%c0_27, %c0_28] : memref<1x1xf32, #tpu.memory_space<vmem>>, vector<1x1xf32>
      %50 = vector.shape_cast %48 : vector<1x128xf32> to vector<1x1x128xf32>
      %cst_29 = arith.constant dense<0.000000e+00> : vector<1xf32>
      %51 = vector.multi_reduction <add>, %50, %cst_29 [1, 2] : vector<1x1x128xf32> to vector<1xf32>
      %52 = vector.shape_cast %51 : vector<1xf32> to vector<1x1x1xf32>
      %53 = vector.extract %52[0, 0, 0] : f32 from vector<1x1x1xf32>
      %54 = vector.broadcast %53 : f32 to vector<1x1xf32>
      %cst_30 = arith.constant 5.000000e-01 : f32
      %55 = vector.broadcast %cst_30 : f32 to vector<1x1xf32>
      %56 = arith.mulf %55, %54 : vector<1x1xf32>
      %57 = arith.addf %49, %56 : vector<1x1xf32>
      %c0_31 = arith.constant 0 : index
      %c0_32 = arith.constant 0 : index
      %58 = vector.load %arg10[%c0_31, %c0_32] : memref<1x1xf32, #tpu.memory_space<vmem>>, vector<1x1xf32>
      tpu.vector_store %arg10[%c0_31, %c0_32], %57 {strides = array<i32>} : memref<1x1xf32, #tpu.memory_space<vmem>>, vector<1x1xf32>,
    } else {
    }
    %c1_i32_20 = arith.constant 1 : i32
    %36 = arith.cmpi eq, %arg0, %c1_i32_20 : i32
    %c1_i32_21 = arith.constant 1 : i32
    %37 = arith.cmpi eq, %arg1, %c1_i32_21 : i32
    %38 = arith.andi %36, %37 : i1
    %39 = arith.extui %38 : i1 to i32
    %c0_i32_22 = arith.constant 0 : i32
    %40 = arith.cmpi ne, %39, %c0_i32_22 : i32
    scf.if %40 {
      %c0_23 = arith.constant 0 : index
      %c0_24 = arith.constant 0 : index
      %41 = vector.load %arg10[%c0_23, %c0_24] : memref<1x1xf32, #tpu.memory_space<vmem>>, vector<1x1xf32>
      %cst_25 = arith.constant 3.906250e-03 : f32
      %42 = vector.broadcast %cst_25 : f32 to vector<1x1xf32>
      %43 = arith.mulf %41, %42 : vector<1x1xf32>
      %c0_26 = arith.constant 0 : index
      %c0_27 = arith.constant 0 : index
      %44 = vector.load %arg5[%c0_26, %c0_27] : memref<1x1xf32, #tpu.memory_space<vmem>>, vector<1x1xf32>
      tpu.vector_store %arg5[%c0_26, %c0_27], %43 {strides = array<i32>} : memref<1x1xf32, #tpu.memory_space<vmem>>, vector<1x1xf32>,
    } else {
    }
    return
  }
  func.func @transform_0(%arg0: i32, %arg1: i32) -> i32 {
    %c0_i32 = arith.constant 0 : i32
    %c0_i32_0 = arith.constant 0 : i32
    return %c0_i32 : i32
  }
  func.func @transform_1(%arg0: i32, %arg1: i32) -> (i32, i32) {
    %c0_i32 = arith.constant 0 : i32
    %c0_i32_0 = arith.constant 0 : i32
    return %arg0, %c0_i32 : i32, i32
  }
  func.func @transform_2(%arg0: i32, %arg1: i32) -> (i32, i32) {
    %c0_i32 = arith.constant 0 : i32
    %c0_i32_0 = arith.constant 0 : i32
    return %arg1, %c0_i32 : i32, i32
  }
  func.func @transform_3(%arg0: i32, %arg1: i32) -> (i32, i32) {
    %c0_i32 = arith.constant 0 : i32
    %c0_i32_0 = arith.constant 0 : i32
    %c0_i32_1 = arith.constant 0 : i32
    return %c0_i32, %c0_i32_0 : i32, i32
  }
}

</mosaic_0001>

<llo_original>
// kernel: tpu_custom_call.1
$region0: #{tpu_custom_call.1}
  #allocation0 [shape = 'u32[]', space=smem, size = 0x4, offset = 0x4, fixed_abs, tag = 'smem constant byte address 0x4 - core index']
  #allocation1 [shape = 'u32[144,128]{1,0:T(1,128)}', space=vmem, size = 0x12000, scoped, tag = 'internal scratch']
  #allocation2 [shape = 'f32[128,1]{1,0:T(8,128)}', space=vmem, size = 0x10000, scoped, tag = 'scratch operand']
  #allocation3 [shape = 'f32[128,1]{1,0:T(8,128)}', space=vmem, size = 0x10000, scoped, tag = 'scratch operand']
  #allocation4 [shape = 'f32[2,1,128]{2,1,0:T(1,128)}', space=vmem, size = 0x400, scoped, tag = 'scratch operand']
  #allocation5 [shape = 'f32[2,1,128]{2,1,0:T(1,128)}', space=vmem, size = 0x400, scoped, tag = 'scratch operand']
  #allocation6 [shape = 'f32[1,1]{1,0:T(1,128)}', space=vmem, size = 0x200, scoped, tag = 'scratch operand']
  #allocation7 [shape = 'f32[1]{0:T(128)S(6)}', space=smem, size = 0x200, scoped, tag = 'scoped memory for tpu_custom_call.1']
  %s0 = inlined_call_operand.<no memory space> [shape: f32[1], index: 0, kind: input, shape index: {}]
  %s1 = inlined_call_operand.vmem [shape: f32[256,64], index: 1, kind: input, shape index: {}]
  %s2 = inlined_call_operand.vmem [shape: f32[256,64], index: 2, kind: input, shape index: {}]
  %s3 = inlined_call_operand.hbm [shape: f32[1,1], index: 3, kind: output, shape index: {}]
  %s4 = sld [smem:[#allocation0]]
  $region81: #{tpu_custom_call.1} parent=0
    _
  %s6 = ssub.s32 1, %s4
  %s7 = scalar_select 0, %s6, %s4
  %8 = sst [smem:[#allocation7]] %s0
  $region1: #{tpu_custom_call.1} parent=0
    #allocation8 [shape = 'u8[512]{0}', space=vmem, size = 0x400, scoped, tag = 'output window, operand 0, single buffered']
    #allocation9 [shape = 's32[2]{0}', space=sflag, size = 0x8, scoped, tag = 'scoped memory for tpu_custom_call.1']
    %9 = vsyncpa [#allocation9], 0
    loop: start=0, step=1, limit=6
    $region2: #{tpu_custom_call.1} parent=1 // loop_pre_header
      _
    $region3: #{tpu_custom_call.1} parent=1 // loop_header
      %s11 = sphi 0, %s15
      %p12 = scmp.ge.s32.totalorder %s11, 6
      %s18 = sphi 0, %s30
      %s19 = sphi 0, %s26
      %s20 = sphi 0, %s18
      %s21 = sphi 0, %s19
      %s22 = sphi 0, %s20
      %s23 = sphi 0, %s21
      %s31 = sphi 0, %s31
      %s33 = sphi 0, %s31
      %s34 = sphi 0, %s33
      %s48 = sphi 0, %s34
      %s54 = sphi 0, %s56
      %s57 = sphi 0, %s54
      %s58 = sphi 0, %s57
      %s74 = sphi 0, %s58
      %s80 = sphi 0, %s82
      %s83 = sphi 0, %s80
      %s84 = sphi 0, %s83
      %s100 = sphi 0, %s84
      %s104 = sphi 0, %s104
      %s106 = sphi 0, %s104
      %s107 = sphi 0, %s106
      %s121 = sphi 0, %s107
    $region4: #{tpu_custom_call.1} parent=1 // loop_header_branch
      %14 = sbr.rel (%p12) target = $region8
    $region5: #{tpu_custom_call.1} parent=1 // loop_body
      %s16 = ssub.s32 %s11, 1
      %s17 = ssub.s32 %s11, 2
      %s24 = sadd.s32 1, %s19
      %p25 = scmp.ge.s32.totalorder %s24, 2
      %s26 = scalar_select %p25, 0, %s24
      %s27 = sadd.s32 1, %s18
      %s28 = scalar_select %p25, %s27, %s18
      %p29 = scmp.ge.s32.totalorder %s28, 2
      %s30 = scalar_select %p29, 0, %s28
      %s32 = sadd.s32 %s31, 1
      %p35 = scmp.eq.s32.totalorder %s11, 3
      %p36 = scmp.ne.s32.totalorder %s31, %s33
      %p37 = scmp.eq.s32.totalorder %s11, 0
      %p38 = por %p36, %p37
      %p39 = scmp.ne.s32.totalorder %s31, %s33
      %p40 = scmp.eq.s32.totalorder %s16, 3
      %p41 = por %p39, %p40
      %p42 = scmp.ne.s32.totalorder %s33, %s34
      %p43 = scmp.eq.s32.totalorder %s16, 0
      %p44 = por %p42, %p43
      %p45 = scmp.ne.s32.totalorder %s33, %s34
      %p46 = scmp.eq.s32.totalorder %s17, 3
      %p47 = por %p45, %p46
      %p49 = scmp.ne.s32.totalorder %s34, %s48
      %p50 = scmp.eq.s32.totalorder %s17, 0
      %p51 = por %p49, %p50
      %s52 = ssub.s32 %s18, %s30
      %p53 = scmp.eq.s32.totalorder %s52, 0
      %s55 = sadd.s32 %s54, 1
      %s56 = scalar_select %p53, %s54, %s55
      %p59 = pneg %p53
      %p60 = scmp.eq.s32.totalorder %s11, 3
      %p61 = por %p59, %p60
      %p62 = scmp.ne.s32.totalorder %s54, %s57
      %p63 = scmp.eq.s32.totalorder %s11, 0
      %p64 = por %p62, %p63
      %p65 = scmp.ne.s32.totalorder %s54, %s57
      %p66 = scmp.eq.s32.totalorder %s16, 3
      %p67 = por %p65, %p66
      %p68 = scmp.ne.s32.totalorder %s57, %s58
      %p69 = scmp.eq.s32.totalorder %s16, 0
      %p70 = por %p68, %p69
      %p71 = scmp.ne.s32.totalorder %s57, %s58
      %p72 = scmp.eq.s32.totalorder %s17, 3
      %p73 = por %p71, %p72
      %p75 = scmp.ne.s32.totalorder %s58, %s74
      %p76 = scmp.eq.s32.totalorder %s17, 0
      %p77 = por %p75, %p76
      %s78 = ssub.s32 %s19, %s26
      %p79 = scmp.eq.s32.totalorder %s78, 0
      %s81 = sadd.s32 %s80, 1
      %s82 = scalar_select %p79, %s80, %s81
      %p85 = pneg %p79
      %p86 = scmp.eq.s32.totalorder %s11, 3
      %p87 = por %p85, %p86
      %p88 = scmp.ne.s32.totalorder %s80, %s83
      %p89 = scmp.eq.s32.totalorder %s11, 0
      %p90 = por %p88, %p89
      %p91 = scmp.ne.s32.totalorder %s80, %s83
      %p92 = scmp.eq.s32.totalorder %s16, 3
      %p93 = por %p91, %p92
      %p94 = scmp.ne.s32.totalorder %s83, %s84
      %p95 = scmp.eq.s32.totalorder %s16, 0
      %p96 = por %p94, %p95
      %p97 = scmp.ne.s32.totalorder %s83, %s84
      %p98 = scmp.eq.s32.totalorder %s17, 3
      %p99 = por %p97, %p98
      %p101 = scmp.ne.s32.totalorder %s84, %s100
      %p102 = scmp.eq.s32.totalorder %s17, 0
      %p103 = por %p101, %p102
      %s105 = sadd.s32 %s104, 1
      %p108 = scmp.eq.s32.totalorder %s11, 3
      %p109 = scmp.ne.s32.totalorder %s104, %s106
      %p110 = scmp.eq.s32.totalorder %s11, 0
      %p111 = por %p109, %p110
      %p112 = scmp.ne.s32.totalorder %s104, %s106
      %p113 = scmp.eq.s32.totalorder %s16, 3
      %p114 = por %p112, %p113
      %p115 = scmp.ne.s32.totalorder %s106, %s107
      %p116 = scmp.eq.s32.totalorder %s16, 0
      %p117 = por %p115, %p116
      %p118 = scmp.ne.s32.totalorder %s106, %s107
      %p119 = scmp.eq.s32.totalorder %s17, 3
      %p120 = por %p118, %p119
      %p122 = scmp.ne.s32.totalorder %s107, %s121
      %p123 = scmp.eq.s32.totalorder %s17, 0
      %p124 = por %p122, %p123
      %p125 = scmp.le.s32.totalorder 1, %s11
      %p126 = scmp.lt.s32.totalorder %s11, 5
      %p127 = pnand %p125, %p126
      %p128 = pneg %p127
      // Predicated region
      $region9: #{tpu_custom_call.1} parent=5 // pred_check
        _
      $region10: #{tpu_custom_call.1} parent=5 // pred_check_branch
        %130 = sbr.rel (%p127) target = $region12
      $region11: #{tpu_custom_call.1} parent=5 // pred_region
        %s131 = ssub.s32 %s11, 1
        // Predicated region
        $region13: #{tpu_custom_call.1} parent=11 // pred_check
          %p132 = pneg %p44
        $region14: #{tpu_custom_call.1} parent=11 // pred_check_branch
          %134 = sbr.rel (%p132) target = $region16
        $region15: #{tpu_custom_call.1} parent=11 // pred_region
          _
        $region16: #{tpu_custom_call.1} parent=11 // pred_fallthru
          _
      $region12: #{tpu_custom_call.1} parent=5 // pred_fallthru
        _
      %p135 = scmp.lt.s32.totalorder %s11, 4
      // Predicated region
      $region17: #{tpu_custom_call.1} parent=5 // pred_check
        %p136 = pneg %p135
      $region18: #{tpu_custom_call.1} parent=5 // pred_check_branch
        %138 = sbr.rel (%p136) target = $region20
      $region19: #{tpu_custom_call.1} parent=5 // pred_region
        // Predicated region
        $region21: #{tpu_custom_call.1} parent=19 // pred_check
          %p139 = pneg %p64
        $region22: #{tpu_custom_call.1} parent=19 // pred_check_branch
          %141 = sbr.rel (%p139) target = $region24
        $region23: #{tpu_custom_call.1} parent=19 // pred_region
          %s142 = smul.u32 16, %s18
          %p143 = scmp.lt.s32.totalorder %s142, 31
          %s144 = scalar_select %p143, %s142, 31
          %s145 = smul.addr %s144, 8
          %s146 = scalar_lea.vmem %s1, %s145
          %s147 = smul.u32 16, %s18
        $region24: #{tpu_custom_call.1} parent=19 // pred_fallthru
          _
        // Predicated region
        $region25: #{tpu_custom_call.1} parent=19 // pred_check
          %p148 = pneg %p90
        $region26: #{tpu_custom_call.1} parent=19 // pred_check_branch
          %150 = sbr.rel (%p148) target = $region28
        $region27: #{tpu_custom_call.1} parent=19 // pred_region
          %s151 = smul.u32 16, %s19
          %p152 = scmp.lt.s32.totalorder %s151, 31
          %s153 = scalar_select %p152, %s151, 31
          %s154 = smul.addr %s153, 8
          %s155 = scalar_lea.vmem %s2, %s154
          %s156 = smul.u32 16, %s19
        $region28: #{tpu_custom_call.1} parent=19 // pred_fallthru
          _
      $region20: #{tpu_custom_call.1} parent=5 // pred_fallthru
        _
      %p157 = scmp.le.s32.totalorder 1, %s11
      %p158 = scmp.lt.s32.totalorder %s11, 5
      %p159 = pnand %p157, %p158
      %p160 = pneg %p159
      // Predicated region
      $region29: #{tpu_custom_call.1} parent=5 // pred_check
        _
      $region30: #{tpu_custom_call.1} parent=5 // pred_check_branch
        %162 = sbr.rel (%p159) target = $region32
      $region31: #{tpu_custom_call.1} parent=5 // pred_region
        %s163 = ssub.s32 %s11, 1
        %p164 = pneg %p44
        %p165 = pneg %p41
        %s166 = smul.u32 16, %s20
        %p167 = scmp.lt.s32.totalorder %s166, 31
        %s168 = scalar_select %p167, %s166, 31
        %s169 = smul.addr %s168, 8
        %s170 = scalar_lea.vmem %s1, %s169
        %p171 = pneg %p70
        %p172 = pneg %p67
        %s173 = smul.u32 16, %s21
        %p174 = scmp.lt.s32.totalorder %s173, 31
        %s175 = scalar_select %p174, %s173, 31
        %s176 = smul.addr %s175, 8
        %s177 = scalar_lea.vmem %s2, %s176
        %p178 = pneg %p96
        %p179 = pneg %p93
        %p180 = pneg %p117
        %p181 = pneg %p114
        %s182 = smul.u32 16, %s20
        %p183 = scmp.lt.s32.totalorder %s182, 31
        %s184 = scalar_select %p183, %s182, 31
        %s185 = smul.addr %s184, 8
        %s186 = scalar_lea.vmem %s1, %s185
        %s187 = smul.u32 16, %s20
        %s188 = smul.u32 16, %s21
        %p189 = scmp.lt.s32.totalorder %s188, 31
        %s190 = scalar_select %p189, %s188, 31
        %s191 = smul.addr %s190, 8
        %s192 = scalar_lea.vmem %s2, %s191
        %s193 = smul.u32 16, %s21
        %s194 = sld [smem:[#allocation7]]
        %v195 = vld [vmem:[%s186] sm:$0xff]
        %v196 = vld [vmem:[%s186 + $0x8] sm:$0xff]
        %v197 = vld [vmem:[%s186 + $0x10] sm:$0xff]
        %v198 = vld [vmem:[%s186 + $0x18] sm:$0xff]
        %v199 = vld [vmem:[%s186 + $0x20] sm:$0xff]
        %v200 = vld [vmem:[%s186 + $0x28] sm:$0xff]
        %v201 = vld [vmem:[%s186 + $0x30] sm:$0xff]
        %v202 = vld [vmem:[%s186 + $0x38] sm:$0xff]
        %v203 = vld [vmem:[%s186 + $0x40] sm:$0xff]
        %v204 = vld [vmem:[%s186 + $0x48] sm:$0xff]
        %v205 = vld [vmem:[%s186 + $0x50] sm:$0xff]
        %v206 = vld [vmem:[%s186 + $0x58] sm:$0xff]
        %v207 = vld [vmem:[%s186 + $0x60] sm:$0xff]
        %v208 = vld [vmem:[%s186 + $0x68] sm:$0xff]
        %v209 = vld [vmem:[%s186 + $0x70] sm:$0xff]
        %v210 = vld [vmem:[%s186 + $0x78] sm:$0xff]
        %v211 = vld [vmem:[%s192] sm:$0xff]
        %v212 = vld [vmem:[%s192 + $0x8] sm:$0xff]
        %v213 = vld [vmem:[%s192 + $0x10] sm:$0xff]
        %v214 = vld [vmem:[%s192 + $0x18] sm:$0xff]
        %v215 = vld [vmem:[%s192 + $0x20] sm:$0xff]
        %v216 = vld [vmem:[%s192 + $0x28] sm:$0xff]
        %v217 = vld [vmem:[%s192 + $0x30] sm:$0xff]
        %v218 = vld [vmem:[%s192 + $0x38] sm:$0xff]
        %v219 = vld [vmem:[%s192 + $0x40] sm:$0xff]
        %v220 = vld [vmem:[%s192 + $0x48] sm:$0xff]
        %v221 = vld [vmem:[%s192 + $0x50] sm:$0xff]
        %v222 = vld [vmem:[%s192 + $0x58] sm:$0xff]
        %v223 = vld [vmem:[%s192 + $0x60] sm:$0xff]
        %v224 = vld [vmem:[%s192 + $0x68] sm:$0xff]
        %v225 = vld [vmem:[%s192 + $0x70] sm:$0xff]
        %v226 = vld [vmem:[%s192 + $0x78] sm:$0xff]
        %vm227 = vcmask 523264
        %v229 = vsel %vm227, %v195, 0
        %v232 = vsel %vm227, %v196, 0
        %v235 = vsel %vm227, %v197, 0
        %v238 = vsel %vm227, %v198, 0
        %v241 = vsel %vm227, %v199, 0
        %v244 = vsel %vm227, %v200, 0
        %v247 = vsel %vm227, %v201, 0
        %v250 = vsel %vm227, %v202, 0
        %v253 = vsel %vm227, %v203, 0
        %v256 = vsel %vm227, %v204, 0
        %v259 = vsel %vm227, %v205, 0
        %v262 = vsel %vm227, %v206, 0
        %v265 = vsel %vm227, %v207, 0
        %v268 = vsel %vm227, %v208, 0
        %v271 = vsel %vm227, %v209, 0
        %v274 = vsel %vm227, %v210, 0
        %v277 = vsel %vm227, %v211, 0
        %v280 = vsel %vm227, %v212, 0
        %v283 = vsel %vm227, %v213, 0
        %v286 = vsel %vm227, %v214, 0
        %v289 = vsel %vm227, %v215, 0
        %v292 = vsel %vm227, %v216, 0
        %v295 = vsel %vm227, %v217, 0
        %v298 = vsel %vm227, %v218, 0
        %v301 = vsel %vm227, %v219, 0
        %v304 = vsel %vm227, %v220, 0
        %v307 = vsel %vm227, %v221, 0
        %v310 = vsel %vm227, %v222, 0
        %v313 = vsel %vm227, %v223, 0
        %v316 = vsel %vm227, %v224, 0
        %v319 = vsel %vm227, %v225, 0
        %v322 = vsel %vm227, %v226, 0
        %324 = vmatprep.subr.mxu0 0.0
        %325 = vmatpush1.xpose.msra.mxu0 %v277
        %326 = vmatprep.subr.mxu0 0.0
        %327 = vmatpush1.xpose.msra.mxu0 %v280
        %328 = vmatprep.subr.mxu0 0.0
        %329 = vmatpush1.xpose.msra.mxu0 %v283
        %330 = vmatprep.subr.mxu0 0.0
        %331 = vmatpush1.xpose.msra.mxu0 %v286
        %332 = vmatprep.subr.mxu0 0.0
        %333 = vmatpush1.xpose.msra.mxu0 %v289
        %334 = vmatprep.subr.mxu0 0.0
        %335 = vmatpush1.xpose.msra.mxu0 %v292
        %336 = vmatprep.subr.mxu0 0.0
        %337 = vmatpush1.xpose.msra.mxu0 %v295
        %338 = vmatprep.subr.mxu0 0.0
        %339 = vmatpush1.xpose.msra.mxu0 %v298
        %340 = vmatprep.subr.mxu0 0.0
        %341 = vmatpush1.xpose.msra.mxu0 %v301
        %342 = vmatprep.subr.mxu0 0.0
        %343 = vmatpush1.xpose.msra.mxu0 %v304
        %344 = vmatprep.subr.mxu0 0.0
        %345 = vmatpush1.xpose.msra.mxu0 %v307
        %346 = vmatprep.subr.mxu0 0.0
        %347 = vmatpush1.xpose.msra.mxu0 %v310
        %348 = vmatprep.subr.mxu0 0.0
        %349 = vmatpush1.xpose.msra.mxu0 %v313
        %350 = vmatprep.subr.mxu0 0.0
        %351 = vmatpush1.xpose.msra.mxu0 %v316
        %352 = vmatprep.subr.mxu0 0.0
        %353 = vmatpush1.xpose.msra.mxu0 %v319
        %354 = vmatprep.subr.mxu0 0.0
        %355 = vmatpush1.xpose.msra.mxu0 %v322
        %356 = vmatprep.subr.mxu0 0.0
        %357 = vmatpush1.xpose.msra.mxu0 0.0
        %358 = vmatprep.subr.mxu0 0.0
        %359 = vmatpush1.xpose.msra.mxu0 0.0
        %360 = vmatprep.subr.mxu0 0.0
        %361 = vmatpush1.xpose.msra.mxu0 0.0
        %362 = vmatprep.subr.mxu0 0.0
        %363 = vmatpush1.xpose.msra.mxu0 0.0
        %364 = vmatprep.subr.mxu0 0.0
        %365 = vmatpush1.xpose.msra.mxu0 0.0
        %366 = vmatprep.subr.mxu0 0.0
        %367 = vmatpush1.xpose.msra.mxu0 0.0
        %368 = vmatprep.subr.mxu0 0.0
        %369 = vmatpush1.xpose.msra.mxu0 0.0
        %370 = vmatprep.subr.mxu0 0.0
        %371 = vmatpush1.xpose.msra.mxu0 0.0
        %372 = vmatprep.subr.mxu0 0.0
        %373 = vmatpush1.xpose.msra.mxu0 0.0
        %374 = vmatprep.subr.mxu0 0.0
        %375 = vmatpush1.xpose.msra.mxu0 0.0
        %376 = vmatprep.subr.mxu0 0.0
        %377 = vmatpush1.xpose.msra.mxu0 0.0
        %378 = vmatprep.subr.mxu0 0.0
        %379 = vmatpush1.xpose.msra.mxu0 0.0
        %380 = vmatprep.subr.mxu0 0.0
        %381 = vmatpush1.xpose.msra.mxu0 0.0
        %382 = vmatprep.subr.mxu0 0.0
        %383 = vmatpush1.xpose.msra.mxu0 0.0
        %384 = vmatprep.subr.mxu0 0.0
        %385 = vmatpush1.xpose.msra.mxu0 0.0
        %386 = vmatprep.subr.mxu0 0.0
        %387 = vmatpush1.xpose.msra.mxu0 0.0
        %388 = vmatprep.mubr.f32.mxu0 0.0
        %389 = vmatmul.mubr.f32.gmra.mrb[0].mxu0 %v229
        %v390 = vpop.f32.mrb[0].mxu0
        %v391 = vadd.f32 0.0, %v390
        %v392 = vpop.f32.mrb[0].mxu0
        %393 = vmatprep.mubr.f32.mxu0 0.0
        %394 = vmatmul.mubr.f32.gmra.mrb[0].mxu0 %v232
        %v395 = vpop.f32.mrb[0].mxu0
        %v396 = vadd.f32 0.0, %v395
        %v397 = vpop.f32.mrb[0].mxu0
        %398 = vmatprep.mubr.f32.mxu0 0.0
        %399 = vmatmul.mubr.f32.gmra.mrb[0].mxu0 %v235
        %v400 = vpop.f32.mrb[0].mxu0
        %v401 = vadd.f32 0.0, %v400
        %v402 = vpop.f32.mrb[0].mxu0
        %403 = vmatprep.mubr.f32.mxu0 0.0
        %404 = vmatmul.mubr.f32.gmra.mrb[0].mxu0 %v238
        %v405 = vpop.f32.mrb[0].mxu0
        %v406 = vadd.f32 0.0, %v405
        %v407 = vpop.f32.mrb[0].mxu0
        %408 = vmatprep.mubr.f32.mxu0 0.0
        %409 = vmatmul.mubr.f32.gmra.mrb[0].mxu0 %v241
        %v410 = vpop.f32.mrb[0].mxu0
        %v411 = vadd.f32 0.0, %v410
        %v412 = vpop.f32.mrb[0].mxu0
        %413 = vmatprep.mubr.f32.mxu0 0.0
        %414 = vmatmul.mubr.f32.gmra.mrb[0].mxu0 %v244
        %v415 = vpop.f32.mrb[0].mxu0
        %v416 = vadd.f32 0.0, %v415
        %v417 = vpop.f32.mrb[0].mxu0
        %418 = vmatprep.mubr.f32.mxu0 0.0
        %419 = vmatmul.mubr.f32.gmra.mrb[0].mxu0 %v247
        %v420 = vpop.f32.mrb[0].mxu0
        %v421 = vadd.f32 0.0, %v420
        %v422 = vpop.f32.mrb[0].mxu0
        %423 = vmatprep.mubr.f32.mxu0 0.0
        %424 = vmatmul.mubr.f32.gmra.mrb[0].mxu0 %v250
        %v425 = vpop.f32.mrb[0].mxu0
        %v426 = vadd.f32 0.0, %v425
        %v427 = vpop.f32.mrb[0].mxu0
        %428 = vmatprep.mubr.f32.mxu0 0.0
        %429 = vmatmul.mubr.f32.gmra.mrb[0].mxu0 %v253
        %v430 = vpop.f32.mrb[0].mxu0
        %v431 = vadd.f32 0.0, %v430
        %v432 = vpop.f32.mrb[0].mxu0
        %433 = vmatprep.mubr.f32.mxu0 0.0
        %434 = vmatmul.mubr.f32.gmra.mrb[0].mxu0 %v256
        %v435 = vpop.f32.mrb[0].mxu0
        %v436 = vadd.f32 0.0, %v435
        %v437 = vpop.f32.mrb[0].mxu0
        %438 = vmatprep.mubr.f32.mxu0 0.0
        %439 = vmatmul.mubr.f32.gmra.mrb[0].mxu0 %v259
        %v440 = vpop.f32.mrb[0].mxu0
        %v441 = vadd.f32 0.0, %v440
        %v442 = vpop.f32.mrb[0].mxu0
        %443 = vmatprep.mubr.f32.mxu0 0.0
        %444 = vmatmul.mubr.f32.gmra.mrb[0].mxu0 %v262
        %v445 = vpop.f32.mrb[0].mxu0
        %v446 = vadd.f32 0.0, %v445
        %v447 = vpop.f32.mrb[0].mxu0
        %448 = vmatprep.mubr.f32.mxu0 0.0
        %449 = vmatmul.mubr.f32.gmra.mrb[0].mxu0 %v265
        %v450 = vpop.f32.mrb[0].mxu0
        %v451 = vadd.f32 0.0, %v450
        %v452 = vpop.f32.mrb[0].mxu0
        %453 = vmatprep.mubr.f32.mxu0 0.0
        %454 = vmatmul.mubr.f32.gmra.mrb[0].mxu0 %v268
        %v455 = vpop.f32.mrb[0].mxu0
        %v456 = vadd.f32 0.0, %v455
        %v457 = vpop.f32.mrb[0].mxu0
        %458 = vmatprep.mubr.f32.mxu0 0.0
        %459 = vmatmul.mubr.f32.gmra.mrb[0].mxu0 %v271
        %v460 = vpop.f32.mrb[0].mxu0
        %v461 = vadd.f32 0.0, %v460
        %v462 = vpop.f32.mrb[0].mxu0
        %463 = vmatprep.mubr.f32.mxu0 0.0
        %464 = vmatmul.mubr.f32.gmra.mrb[0].mxu0 %v274
        %v465 = vpop.f32.mrb[0].mxu0
        %v466 = vadd.f32 0.0, %v465
        %v467 = vpop.f32.mrb[0].mxu0
        %468 = vdwg.mxu0
        %v469 = vstv %s194
        %v470 = vmul.f32 %v469, %v391
        %v471 = vmul.f32 %v469, %v396
        %v472 = vmul.f32 %v469, %v401
        %v473 = vmul.f32 %v469, %v406
        %v474 = vmul.f32 %v469, %v411
        %v475 = vmul.f32 %v469, %v416
        %v476 = vmul.f32 %v469, %v421
        %v477 = vmul.f32 %v469, %v426
        %v478 = vmul.f32 %v469, %v431
        %v479 = vmul.f32 %v469, %v436
        %v480 = vmul.f32 %v469, %v441
        %v481 = vmul.f32 %v469, %v446
        %v482 = vmul.f32 %v469, %v451
        %v483 = vmul.f32 %v469, %v456
        %v484 = vmul.f32 %v469, %v461
        %v485 = vmul.f32 %v469, %v466
        %p486 = scmp.eq.s32.totalorder %s20, 0
        %p487 = scmp.eq.s32.totalorder %s21, 0
        %p488 = pnand %p486, %p487
        %p489 = pneg %p488
        // Predicated region
        $region33: #{tpu_custom_call.1} parent=31 // pred_check
          _
        $region34: #{tpu_custom_call.1} parent=31 // pred_check_branch
          %491 = sbr.rel (%p488) target = $region36
        $region35: #{tpu_custom_call.1} parent=31 // pred_region
          %vm492 = vcmask 0
          %493 = vst.msk [vmem:[#allocation6] sm:$0x1] %vm492, 0.0
        $region36: #{tpu_custom_call.1} parent=31 // pred_fallthru
          _
        %494 = vmax.xlane.f32.xlu0 %v470
        %v495 = vpop.xlane.xlu0 %494
        %496 = vmax.xlane.f32.xlu0 %v471
        %v497 = vpop.xlane.xlu0 %496
        %498 = vmax.xlane.f32.xlu0 %v472
        %v499 = vpop.xlane.xlu0 %498
        %500 = vmax.xlane.f32.xlu0 %v473
        %v501 = vpop.xlane.xlu0 %500
        %502 = vmax.xlane.f32.xlu0 %v474
        %v503 = vpop.xlane.xlu0 %502
        %504 = vmax.xlane.f32.xlu0 %v475
        %v505 = vpop.xlane.xlu0 %504
        %506 = vmax.xlane.f32.xlu0 %v476
        %v507 = vpop.xlane.xlu0 %506
        %508 = vmax.xlane.f32.xlu0 %v477
        %v509 = vpop.xlane.xlu0 %508
        %510 = vmax.xlane.f32.xlu0 %v478
        %v511 = vpop.xlane.xlu0 %510
        %512 = vmax.xlane.f32.xlu0 %v479
        %v513 = vpop.xlane.xlu0 %512
        %514 = vmax.xlane.f32.xlu0 %v480
        %v515 = vpop.xlane.xlu0 %514
        %516 = vmax.xlane.f32.xlu0 %v481
        %v517 = vpop.xlane.xlu0 %516
        %518 = vmax.xlane.f32.xlu0 %v482
        %v519 = vpop.xlane.xlu0 %518
        %520 = vmax.xlane.f32.xlu0 %v483
        %v521 = vpop.xlane.xlu0 %520
        %522 = vmax.xlane.f32.xlu0 %v484
        %v523 = vpop.xlane.xlu0 %522
        %524 = vmax.xlane.f32.xlu0 %v485
        %v525 = vpop.xlane.xlu0 %524
        // Predicated region
        $region37: #{tpu_custom_call.1} parent=31 // pred_check
          %p526 = pneg %p487
        $region38: #{tpu_custom_call.1} parent=31 // pred_check_branch
          %528 = sbr.rel (%p526) target = $region40
        $region39: #{tpu_custom_call.1} parent=31 // pred_region
          %vm529 = vcmask 7168
          %530 = vst.msk [vmem:[#allocation2] sm:$0xff] %vm529, %v495
          %531 = vst.msk [vmem:[#allocation2 + $0x8] sm:$0xff] %vm529, %v497
          %532 = vst.msk [vmem:[#allocation2 + $0x10] sm:$0xff] %vm529, %v499
          %533 = vst.msk [vmem:[#allocation2 + $0x18] sm:$0xff] %vm529, %v501
          %534 = vst.msk [vmem:[#allocation2 + $0x20] sm:$0xff] %vm529, %v503
          %535 = vst.msk [vmem:[#allocation2 + $0x28] sm:$0xff] %vm529, %v505
          %536 = vst.msk [vmem:[#allocation2 + $0x30] sm:$0xff] %vm529, %v507
          %537 = vst.msk [vmem:[#allocation2 + $0x38] sm:$0xff] %vm529, %v509
          %538 = vst.msk [vmem:[#allocation2 + $0x40] sm:$0xff] %vm529, %v511
          %539 = vst.msk [vmem:[#allocation2 + $0x48] sm:$0xff] %vm529, %v513
          %540 = vst.msk [vmem:[#allocation2 + $0x50] sm:$0xff] %vm529, %v515
          %541 = vst.msk [vmem:[#allocation2 + $0x58] sm:$0xff] %vm529, %v517
          %542 = vst.msk [vmem:[#allocation2 + $0x60] sm:$0xff] %vm529, %v519
          %543 = vst.msk [vmem:[#allocation2 + $0x68] sm:$0xff] %vm529, %v521
          %544 = vst.msk [vmem:[#allocation2 + $0x70] sm:$0xff] %vm529, %v523
          %545 = vst.msk [vmem:[#allocation2 + $0x78] sm:$0xff] %vm529, %v525
          %v546 = vsub.f32 %v470, %v495
          %v547 = vsub.f32 %v471, %v497
          %v548 = vsub.f32 %v472, %v499
          %v549 = vsub.f32 %v473, %v501
          %v550 = vsub.f32 %v474, %v503
          %v551 = vsub.f32 %v475, %v505
          %v552 = vsub.f32 %v476, %v507
          %v553 = vsub.f32 %v477, %v509
          %v554 = vsub.f32 %v478, %v511
          %v555 = vsub.f32 %v479, %v513
          %v556 = vsub.f32 %v480, %v515
          %v557 = vsub.f32 %v481, %v517
          %v558 = vsub.f32 %v482, %v519
          %v559 = vsub.f32 %v483, %v521
          %v560 = vsub.f32 %v484, %v523
          %v561 = vsub.f32 %v485, %v525
          %v562 = vmul.f32 %v546, 1.442695
          %v563 = vpow.pop %v562
          %v564 = vmul.f32 %v547, 1.442695
          %v565 = vpow.pop %v564
          %v566 = vmul.f32 %v548, 1.442695
          %v567 = vpow.pop %v566
          %v568 = vmul.f32 %v549, 1.442695
          %v569 = vpow.pop %v568
          %v570 = vmul.f32 %v550, 1.442695
          %v571 = vpow.pop %v570
          %v572 = vmul.f32 %v551, 1.442695
          %v573 = vpow.pop %v572
          %v574 = vmul.f32 %v552, 1.442695
          %v575 = vpow.pop %v574
          %v576 = vmul.f32 %v553, 1.442695
          %v577 = vpow.pop %v576
          %v578 = vmul.f32 %v554, 1.442695
          %v579 = vpow.pop %v578
          %v580 = vmul.f32 %v555, 1.442695
          %v581 = vpow.pop %v580
          %v582 = vmul.f32 %v556, 1.442695
          %v583 = vpow.pop %v582
          %v584 = vmul.f32 %v557, 1.442695
          %v585 = vpow.pop %v584
          %v586 = vmul.f32 %v558, 1.442695
          %v587 = vpow.pop %v586
          %v588 = vmul.f32 %v559, 1.442695
          %v589 = vpow.pop %v588
          %v590 = vmul.f32 %v560, 1.442695
          %v591 = vpow.pop %v590
          %v592 = vmul.f32 %v561, 1.442695
          %v593 = vpow.pop %v592
          %594 = vadd.xlane.f32.xlu0 %v563
          %v595 = vpop.xlane.xlu0 %594
          %596 = vadd.xlane.f32.xlu0 %v565
          %v597 = vpop.xlane.xlu0 %596
          %598 = vadd.xlane.f32.xlu0 %v567
          %v599 = vpop.xlane.xlu0 %598
          %600 = vadd.xlane.f32.xlu0 %v569
          %v601 = vpop.xlane.xlu0 %600
          %602 = vadd.xlane.f32.xlu0 %v571
          %v603 = vpop.xlane.xlu0 %602
          %604 = vadd.xlane.f32.xlu0 %v573
          %v605 = vpop.xlane.xlu0 %604
          %606 = vadd.xlane.f32.xlu0 %v575
          %v607 = vpop.xlane.xlu0 %606
          %608 = vadd.xlane.f32.xlu0 %v577
          %v609 = vpop.xlane.xlu0 %608
          %610 = vadd.xlane.f32.xlu0 %v579
          %v611 = vpop.xlane.xlu0 %610
          %612 = vadd.xlane.f32.xlu0 %v581
          %v613 = vpop.xlane.xlu0 %612
          %614 = vadd.xlane.f32.xlu0 %v583
          %v615 = vpop.xlane.xlu0 %614
          %616 = vadd.xlane.f32.xlu0 %v585
          %v617 = vpop.xlane.xlu0 %616
          %618 = vadd.xlane.f32.xlu0 %v587
          %v619 = vpop.xlane.xlu0 %618
          %620 = vadd.xlane.f32.xlu0 %v589
          %v621 = vpop.xlane.xlu0 %620
          %622 = vadd.xlane.f32.xlu0 %v591
          %v623 = vpop.xlane.xlu0 %622
          %624 = vadd.xlane.f32.xlu0 %v593
          %v625 = vpop.xlane.xlu0 %624
          %626 = vst.msk [vmem:[#allocation3] sm:$0xff] %vm529, %v595
          %627 = vst.msk [vmem:[#allocation3 + $0x8] sm:$0xff] %vm529, %v597
          %628 = vst.msk [vmem:[#allocation3 + $0x10] sm:$0xff] %vm529, %v599
          %629 = vst.msk [vmem:[#allocation3 + $0x18] sm:$0xff] %vm529, %v601
          %630 = vst.msk [vmem:[#allocation3 + $0x20] sm:$0xff] %vm529, %v603
          %631 = vst.msk [vmem:[#allocation3 + $0x28] sm:$0xff] %vm529, %v605
          %632 = vst.msk [vmem:[#allocation3 + $0x30] sm:$0xff] %vm529, %v607
          %633 = vst.msk [vmem:[#allocation3 + $0x38] sm:$0xff] %vm529, %v609
          %634 = vst.msk [vmem:[#allocation3 + $0x40] sm:$0xff] %vm529, %v611
          %635 = vst.msk [vmem:[#allocation3 + $0x48] sm:$0xff] %vm529, %v613
          %636 = vst.msk [vmem:[#allocation3 + $0x50] sm:$0xff] %vm529, %v615
          %637 = vst.msk [vmem:[#allocation3 + $0x58] sm:$0xff] %vm529, %v617
          %638 = vst.msk [vmem:[#allocation3 + $0x60] sm:$0xff] %vm529, %v619
          %639 = vst.msk [vmem:[#allocation3 + $0x68] sm:$0xff] %vm529, %v621
          %640 = vst.msk [vmem:[#allocation3 + $0x70] sm:$0xff] %vm529, %v623
          %641 = vst.msk [vmem:[#allocation3 + $0x78] sm:$0xff] %vm529, %v625
        $region40: #{tpu_custom_call.1} parent=31 // pred_fallthru
          _
        %p642 = scmp.gt.s32.totalorder %s21, 0
        // Predicated region
        $region41: #{tpu_custom_call.1} parent=31 // pred_check
          %p643 = pneg %p642
        $region42: #{tpu_custom_call.1} parent=31 // pred_check_branch
          %645 = sbr.rel (%p643) target = $region44
        $region43: #{tpu_custom_call.1} parent=31 // pred_region
          %v646 = vld [vmem:[#allocation2] sm:$0xff]
          %v647 = vld [vmem:[#allocation2 + $0x8] sm:$0xff]
          %v648 = vld [vmem:[#allocation2 + $0x10] sm:$0xff]
          %v649 = vld [vmem:[#allocation2 + $0x18] sm:$0xff]
          %v650 = vld [vmem:[#allocation2 + $0x20] sm:$0xff]
          %v651 = vld [vmem:[#allocation2 + $0x28] sm:$0xff]
          %v652 = vld [vmem:[#allocation2 + $0x30] sm:$0xff]
          %v653 = vld [vmem:[#allocation2 + $0x38] sm:$0xff]
          %v654 = vld [vmem:[#allocation2 + $0x40] sm:$0xff]
          %v655 = vld [vmem:[#allocation2 + $0x48] sm:$0xff]
          %v656 = vld [vmem:[#allocation2 + $0x50] sm:$0xff]
          %v657 = vld [vmem:[#allocation2 + $0x58] sm:$0xff]
          %v658 = vld [vmem:[#allocation2 + $0x60] sm:$0xff]
          %v659 = vld [vmem:[#allocation2 + $0x68] sm:$0xff]
          %v660 = vld [vmem:[#allocation2 + $0x70] sm:$0xff]
          %v661 = vld [vmem:[#allocation2 + $0x78] sm:$0xff]
          %v662 = vmax.f32 %v646, %v495
          %v663 = vmax.f32 %v647, %v497
          %v664 = vmax.f32 %v648, %v499
          %v665 = vmax.f32 %v649, %v501
          %v666 = vmax.f32 %v650, %v503
          %v667 = vmax.f32 %v651, %v505
          %v668 = vmax.f32 %v652, %v507
          %v669 = vmax.f32 %v653, %v509
          %v670 = vmax.f32 %v654, %v511
          %v671 = vmax.f32 %v655, %v513
          %v672 = vmax.f32 %v656, %v515
          %v673 = vmax.f32 %v657, %v517
          %v674 = vmax.f32 %v658, %v519
          %v675 = vmax.f32 %v659, %v521
          %v676 = vmax.f32 %v660, %v523
          %v677 = vmax.f32 %v661, %v525
          %v678 = vld [vmem:[#allocation3] sm:$0xff]
          %v679 = vld [vmem:[#allocation3 + $0x8] sm:$0xff]
          %v680 = vld [vmem:[#allocation3 + $0x10] sm:$0xff]
          %v681 = vld [vmem:[#allocation3 + $0x18] sm:$0xff]
          %v682 = vld [vmem:[#allocation3 + $0x20] sm:$0xff]
          %v683 = vld [vmem:[#allocation3 + $0x28] sm:$0xff]
          %v684 = vld [vmem:[#allocation3 + $0x30] sm:$0xff]
          %v685 = vld [vmem:[#allocation3 + $0x38] sm:$0xff]
          %v686 = vld [vmem:[#allocation3 + $0x40] sm:$0xff]
          %v687 = vld [vmem:[#allocation3 + $0x48] sm:$0xff]
          %v688 = vld [vmem:[#allocation3 + $0x50] sm:$0xff]
          %v689 = vld [vmem:[#allocation3 + $0x58] sm:$0xff]
          %v690 = vld [vmem:[#allocation3 + $0x60] sm:$0xff]
          %v691 = vld [vmem:[#allocation3 + $0x68] sm:$0xff]
          %v692 = vld [vmem:[#allocation3 + $0x70] sm:$0xff]
          %v693 = vld [vmem:[#allocation3 + $0x78] sm:$0xff]
          %v694 = vsub.f32 %v646, %v662
          %v695 = vsub.f32 %v647, %v663
          %v696 = vsub.f32 %v648, %v664
          %v697 = vsub.f32 %v649, %v665
          %v698 = vsub.f32 %v650, %v666
          %v699 = vsub.f32 %v651, %v667
          %v700 = vsub.f32 %v652, %v668
          %v701 = vsub.f32 %v653, %v669
          %v702 = vsub.f32 %v654, %v670
          %v703 = vsub.f32 %v655, %v671
          %v704 = vsub.f32 %v656, %v672
          %v705 = vsub.f32 %v657, %v673
          %v706 = vsub.f32 %v658, %v674
          %v707 = vsub.f32 %v659, %v675
          %v708 = vsub.f32 %v660, %v676
          %v709 = vsub.f32 %v661, %v677
          %v710 = vmul.f32 %v694, 1.442695
          %v711 = vpow.pop %v710
          %v712 = vmul.f32 %v695, 1.442695
          %v713 = vpow.pop %v712
          %v714 = vmul.f32 %v696, 1.442695
          %v715 = vpow.pop %v714
          %v716 = vmul.f32 %v697, 1.442695
          %v717 = vpow.pop %v716
          %v718 = vmul.f32 %v698, 1.442695
          %v719 = vpow.pop %v718
          %v720 = vmul.f32 %v699, 1.442695
          %v721 = vpow.pop %v720
          %v722 = vmul.f32 %v700, 1.442695
          %v723 = vpow.pop %v722
          %v724 = vmul.f32 %v701, 1.442695
          %v725 = vpow.pop %v724
          %v726 = vmul.f32 %v702, 1.442695
          %v727 = vpow.pop %v726
          %v728 = vmul.f32 %v703, 1.442695
          %v729 = vpow.pop %v728
          %v730 = vmul.f32 %v704, 1.442695
          %v731 = vpow.pop %v730
          %v732 = vmul.f32 %v705, 1.442695
          %v733 = vpow.pop %v732
          %v734 = vmul.f32 %v706, 1.442695
          %v735 = vpow.pop %v734
          %v736 = vmul.f32 %v707, 1.442695
          %v737 = vpow.pop %v736
          %v738 = vmul.f32 %v708, 1.442695
          %v739 = vpow.pop %v738
          %v740 = vmul.f32 %v709, 1.442695
          %v741 = vpow.pop %v740
          %v742 = vmul.f32 %v678, %v711
          %v743 = vmul.f32 %v679, %v713
          %v744 = vmul.f32 %v680, %v715
          %v745 = vmul.f32 %v681, %v717
          %v746 = vmul.f32 %v682, %v719
          %v747 = vmul.f32 %v683, %v721
          %v748 = vmul.f32 %v684, %v723
          %v749 = vmul.f32 %v685, %v725
          %v750 = vmul.f32 %v686, %v727
          %v751 = vmul.f32 %v687, %v729
          %v752 = vmul.f32 %v688, %v731
          %v753 = vmul.f32 %v689, %v733
          %v754 = vmul.f32 %v690, %v735
          %v755 = vmul.f32 %v691, %v737
          %v756 = vmul.f32 %v692, %v739
          %v757 = vmul.f32 %v693, %v741
          %759 = vset.pattern.permute.xlu0 0
          %760 = vperm.xlu0 %759, %v662
          %v761 = vpop.permute.xlu0 %760
          %764 = vset.pattern.permute.xlu0 0
          %765 = vperm.xlu0 %764, %v663
          %v766 = vpop.permute.xlu0 %765
          %769 = vset.pattern.permute.xlu0 0
          %770 = vperm.xlu0 %769, %v664
          %v771 = vpop.permute.xlu0 %770
          %774 = vset.pattern.permute.xlu0 0
          %775 = vperm.xlu0 %774, %v665
          %v776 = vpop.permute.xlu0 %775
          %779 = vset.pattern.permute.xlu0 0
          %780 = vperm.xlu0 %779, %v666
          %v781 = vpop.permute.xlu0 %780
          %784 = vset.pattern.permute.xlu0 0
          %785 = vperm.xlu0 %784, %v667
          %v786 = vpop.permute.xlu0 %785
          %789 = vset.pattern.permute.xlu0 0
          %790 = vperm.xlu0 %789, %v668
          %v791 = vpop.permute.xlu0 %790
          %794 = vset.pattern.permute.xlu0 0
          %795 = vperm.xlu0 %794, %v669
          %v796 = vpop.permute.xlu0 %795
          %799 = vset.pattern.permute.xlu0 0
          %800 = vperm.xlu0 %799, %v670
          %v801 = vpop.permute.xlu0 %800
          %804 = vset.pattern.permute.xlu0 0
          %805 = vperm.xlu0 %804, %v671
          %v806 = vpop.permute.xlu0 %805
          %809 = vset.pattern.permute.xlu0 0
          %810 = vperm.xlu0 %809, %v672
          %v811 = vpop.permute.xlu0 %810
          %814 = vset.pattern.permute.xlu0 0
          %815 = vperm.xlu0 %814, %v673
          %v816 = vpop.permute.xlu0 %815
          %819 = vset.pattern.permute.xlu0 0
          %820 = vperm.xlu0 %819, %v674
          %v821 = vpop.permute.xlu0 %820
          %824 = vset.pattern.permute.xlu0 0
          %825 = vperm.xlu0 %824, %v675
          %v826 = vpop.permute.xlu0 %825
          %829 = vset.pattern.permute.xlu0 0
          %830 = vperm.xlu0 %829, %v676
          %v831 = vpop.permute.xlu0 %830
          %834 = vset.pattern.permute.xlu0 0
          %835 = vperm.xlu0 %834, %v677
          %v836 = vpop.permute.xlu0 %835
          %v838 = vsub.f32 %v470, %v761
          %v839 = vsub.f32 %v471, %v766
          %v840 = vsub.f32 %v472, %v771
          %v841 = vsub.f32 %v473, %v776
          %v842 = vsub.f32 %v474, %v781
          %v843 = vsub.f32 %v475, %v786
          %v844 = vsub.f32 %v476, %v791
          %v845 = vsub.f32 %v477, %v796
          %v846 = vsub.f32 %v478, %v801
          %v847 = vsub.f32 %v479, %v806
          %v848 = vsub.f32 %v480, %v811
          %v849 = vsub.f32 %v481, %v816
          %v850 = vsub.f32 %v482, %v821
          %v851 = vsub.f32 %v483, %v826
          %v852 = vsub.f32 %v484, %v831
          %v853 = vsub.f32 %v485, %v836
          %v854 = vmul.f32 %v838, 1.442695
          %v855 = vpow.pop %v854
          %v856 = vmul.f32 %v839, 1.442695
          %v857 = vpow.pop %v856
          %v858 = vmul.f32 %v840, 1.442695
          %v859 = vpow.pop %v858
          %v860 = vmul.f32 %v841, 1.442695
          %v861 = vpow.pop %v860
          %v862 = vmul.f32 %v842, 1.442695
          %v863 = vpow.pop %v862
          %v864 = vmul.f32 %v843, 1.442695
          %v865 = vpow.pop %v864
          %v866 = vmul.f32 %v844, 1.442695
          %v867 = vpow.pop %v866
          %v868 = vmul.f32 %v845, 1.442695
          %v869 = vpow.pop %v868
          %v870 = vmul.f32 %v846, 1.442695
          %v871 = vpow.pop %v870
          %v872 = vmul.f32 %v847, 1.442695
          %v873 = vpow.pop %v872
          %v874 = vmul.f32 %v848, 1.442695
          %v875 = vpow.pop %v874
          %v876 = vmul.f32 %v849, 1.442695
          %v877 = vpow.pop %v876
          %v878 = vmul.f32 %v850, 1.442695
          %v879 = vpow.pop %v878
          %v880 = vmul.f32 %v851, 1.442695
          %v881 = vpow.pop %v880
          %v882 = vmul.f32 %v852, 1.442695
          %v883 = vpow.pop %v882
          %v884 = vmul.f32 %v853, 1.442695
          %v885 = vpow.pop %v884
          %886 = vadd.xlane.f32.xlu0 %v855
          %v887 = vpop.xlane.xlu0 %886
          %888 = vadd.xlane.f32.xlu0 %v857
          %v889 = vpop.xlane.xlu0 %888
          %890 = vadd.xlane.f32.xlu0 %v859
          %v891 = vpop.xlane.xlu0 %890
          %892 = vadd.xlane.f32.xlu0 %v861
          %v893 = vpop.xlane.xlu0 %892
          %894 = vadd.xlane.f32.xlu0 %v863
          %v895 = vpop.xlane.xlu0 %894
          %896 = vadd.xlane.f32.xlu0 %v865
          %v897 = vpop.xlane.xlu0 %896
          %898 = vadd.xlane.f32.xlu0 %v867
          %v899 = vpop.xlane.xlu0 %898
          %900 = vadd.xlane.f32.xlu0 %v869
          %v901 = vpop.xlane.xlu0 %900
          %902 = vadd.xlane.f32.xlu0 %v871
          %v903 = vpop.xlane.xlu0 %902
          %904 = vadd.xlane.f32.xlu0 %v873
          %v905 = vpop.xlane.xlu0 %904
          %906 = vadd.xlane.f32.xlu0 %v875
          %v907 = vpop.xlane.xlu0 %906
          %908 = vadd.xlane.f32.xlu0 %v877
          %v909 = vpop.xlane.xlu0 %908
          %910 = vadd.xlane.f32.xlu0 %v879
          %v911 = vpop.xlane.xlu0 %910
          %912 = vadd.xlane.f32.xlu0 %v881
          %v913 = vpop.xlane.xlu0 %912
          %914 = vadd.xlane.f32.xlu0 %v883
          %v915 = vpop.xlane.xlu0 %914
          %916 = vadd.xlane.f32.xlu0 %v885
          %v917 = vpop.xlane.xlu0 %916
          %v918 = vadd.f32 %v742, %v887
          %v919 = vadd.f32 %v743, %v889
          %v920 = vadd.f32 %v744, %v891
          %v921 = vadd.f32 %v745, %v893
          %v922 = vadd.f32 %v746, %v895
          %v923 = vadd.f32 %v747, %v897
          %v924 = vadd.f32 %v748, %v899
          %v925 = vadd.f32 %v749, %v901
          %v926 = vadd.f32 %v750, %v903
          %v927 = vadd.f32 %v751, %v905
          %v928 = vadd.f32 %v752, %v907
          %v929 = vadd.f32 %v753, %v909
          %v930 = vadd.f32 %v754, %v911
          %v931 = vadd.f32 %v755, %v913
          %v932 = vadd.f32 %v756, %v915
          %v933 = vadd.f32 %v757, %v917
          %vm934 = vcmask 7168
          %935 = vst.msk [vmem:[#allocation3] sm:$0xff] %vm934, %v918
          %936 = vst.msk [vmem:[#allocation3 + $0x8] sm:$0xff] %vm934, %v919
          %937 = vst.msk [vmem:[#allocation3 + $0x10] sm:$0xff] %vm934, %v920
          %938 = vst.msk [vmem:[#allocation3 + $0x18] sm:$0xff] %vm934, %v921
          %939 = vst.msk [vmem:[#allocation3 + $0x20] sm:$0xff] %vm934, %v922
          %940 = vst.msk [vmem:[#allocation3 + $0x28] sm:$0xff] %vm934, %v923
          %941 = vst.msk [vmem:[#allocation3 + $0x30] sm:$0xff] %vm934, %v924
          %942 = vst.msk [vmem:[#allocation3 + $0x38] sm:$0xff] %vm934, %v925
          %943 = vst.msk [vmem:[#allocation3 + $0x40] sm:$0xff] %vm934, %v926
          %944 = vst.msk [vmem:[#allocation3 + $0x48] sm:$0xff] %vm934, %v927
          %945 = vst.msk [vmem:[#allocation3 + $0x50] sm:$0xff] %vm934, %v928
          %946 = vst.msk [vmem:[#allocation3 + $0x58] sm:$0xff] %vm934, %v929
          %947 = vst.msk [vmem:[#allocation3 + $0x60] sm:$0xff] %vm934, %v930
          %948 = vst.msk [vmem:[#allocation3 + $0x68] sm:$0xff] %vm934, %v931
          %949 = vst.msk [vmem:[#allocation3 + $0x70] sm:$0xff] %vm934, %v932
          %950 = vst.msk [vmem:[#allocation3 + $0x78] sm:$0xff] %vm934, %v933
          %951 = vst.msk [vmem:[#allocation2] sm:$0xff] %vm934, %v662
          %952 = vst.msk [vmem:[#allocation2 + $0x8] sm:$0xff] %vm934, %v663
          %953 = vst.msk [vmem:[#allocation2 + $0x10] sm:$0xff] %vm934, %v664
          %954 = vst.msk [vmem:[#allocation2 + $0x18] sm:$0xff] %vm934, %v665
          %955 = vst.msk [vmem:[#allocation2 + $0x20] sm:$0xff] %vm934, %v666
          %956 = vst.msk [vmem:[#allocation2 + $0x28] sm:$0xff] %vm934, %v667
          %957 = vst.msk [vmem:[#allocation2 + $0x30] sm:$0xff] %vm934, %v668
          %958 = vst.msk [vmem:[#allocation2 + $0x38] sm:$0xff] %vm934, %v669
          %959 = vst.msk [vmem:[#allocation2 + $0x40] sm:$0xff] %vm934, %v670
          %960 = vst.msk [vmem:[#allocation2 + $0x48] sm:$0xff] %vm934, %v671
          %961 = vst.msk [vmem:[#allocation2 + $0x50] sm:$0xff] %vm934, %v672
          %962 = vst.msk [vmem:[#allocation2 + $0x58] sm:$0xff] %vm934, %v673
          %963 = vst.msk [vmem:[#allocation2 + $0x60] sm:$0xff] %vm934, %v674
          %964 = vst.msk [vmem:[#allocation2 + $0x68] sm:$0xff] %vm934, %v675
          %965 = vst.msk [vmem:[#allocation2 + $0x70] sm:$0xff] %vm934, %v676
          %966 = vst.msk [vmem:[#allocation2 + $0x78] sm:$0xff] %vm934, %v677
        $region44: #{tpu_custom_call.1} parent=31 // pred_fallthru
          _
        %v967 = vmax.f32 %v470, %v474
        %v968 = vmax.f32 %v471, %v475
        %v969 = vmax.f32 %v472, %v476
        %v970 = vmax.f32 %v473, %v477
        %v971 = vmax.f32 %v967, %v478
        %v972 = vmax.f32 %v968, %v479
        %v973 = vmax.f32 %v969, %v480
        %v974 = vmax.f32 %v970, %v481
        %v975 = vmax.f32 %v971, %v482
        %v976 = vmax.f32 %v972, %v483
        %v977 = vmax.f32 %v973, %v484
        %v978 = vmax.f32 %v974, %v485
        %v979 = vmax.f32 %v975, %v976
        %v980 = vmax.f32 %v977, %v978
        %v981 = vmax.f32 %v979, %v980
        %v982 = vrot.slane %v981, 4
        %v983 = vmax.f32 %v981, %v982
        %v984 = vrot.slane %v983, 2
        %v985 = vmax.f32 %v983, %v984
        %v986 = vrot.slane %v985, 1
        %v987 = vmax.f32 %v985, %v986
        // Predicated region
        $region45: #{tpu_custom_call.1} parent=31 // pred_check
          %p988 = pneg %p486
        $region46: #{tpu_custom_call.1} parent=31 // pred_check_branch
          %990 = sbr.rel (%p988) target = $region48
        $region47: #{tpu_custom_call.1} parent=31 // pred_region
          %s991 = scalar_lea.vmem [#allocation4], %s21
          %992 = vst [vmem:[%s991] sm:$0x1] %v987
          %v993 = vsub.f32 %v470, %v987
          %v994 = vsub.f32 %v471, %v987
          %v995 = vsub.f32 %v472, %v987
          %v996 = vsub.f32 %v473, %v987
          %v997 = vsub.f32 %v474, %v987
          %v998 = vsub.f32 %v475, %v987
          %v999 = vsub.f32 %v476, %v987
          %v1000 = vsub.f32 %v477, %v987
          %v1001 = vsub.f32 %v478, %v987
          %v1002 = vsub.f32 %v479, %v987
          %v1003 = vsub.f32 %v480, %v987
          %v1004 = vsub.f32 %v481, %v987
          %v1005 = vsub.f32 %v482, %v987
          %v1006 = vsub.f32 %v483, %v987
          %v1007 = vsub.f32 %v484, %v987
          %v1008 = vsub.f32 %v485, %v987
          %v1009 = vmul.f32 %v993, 1.442695
          %v1010 = vpow.pop %v1009
          %v1011 = vmul.f32 %v994, 1.442695
          %v1012 = vpow.pop %v1011
          %v1013 = vmul.f32 %v995, 1.442695
          %v1014 = vpow.pop %v1013
          %v1015 = vmul.f32 %v996, 1.442695
          %v1016 = vpow.pop %v1015
          %v1017 = vmul.f32 %v997, 1.442695
          %v1018 = vpow.pop %v1017
          %v1019 = vmul.f32 %v998, 1.442695
          %v1020 = vpow.pop %v1019
          %v1021 = vmul.f32 %v999, 1.442695
          %v1022 = vpow.pop %v1021
          %v1023 = vmul.f32 %v1000, 1.442695
          %v1024 = vpow.pop %v1023
          %v1025 = vmul.f32 %v1001, 1.442695
          %v1026 = vpow.pop %v1025
          %v1027 = vmul.f32 %v1002, 1.442695
          %v1028 = vpow.pop %v1027
          %v1029 = vmul.f32 %v1003, 1.442695
          %v1030 = vpow.pop %v1029
          %v1031 = vmul.f32 %v1004, 1.442695
          %v1032 = vpow.pop %v1031
          %v1033 = vmul.f32 %v1005, 1.442695
          %v1034 = vpow.pop %v1033
          %v1035 = vmul.f32 %v1006, 1.442695
          %v1036 = vpow.pop %v1035
          %v1037 = vmul.f32 %v1007, 1.442695
          %v1038 = vpow.pop %v1037
          %v1039 = vmul.f32 %v1008, 1.442695
          %v1040 = vpow.pop %v1039
          %v1041 = vadd.f32 %v1010, %v1012
          %v1042 = vadd.f32 %v1041, %v1014
          %v1043 = vadd.f32 %v1042, %v1016
          %v1044 = vadd.f32 %v1043, %v1018
          %v1045 = vadd.f32 %v1044, %v1020
          %v1046 = vadd.f32 %v1045, %v1022
          %v1047 = vadd.f32 %v1046, %v1024
          %v1048 = vadd.f32 %v1047, %v1026
          %v1049 = vadd.f32 %v1048, %v1028
          %v1050 = vadd.f32 %v1049, %v1030
          %v1051 = vadd.f32 %v1050, %v1032
          %v1052 = vadd.f32 %v1051, %v1034
          %v1053 = vadd.f32 %v1052, %v1036
          %v1054 = vadd.f32 %v1053, %v1038
          %v1055 = vadd.f32 %v1054, %v1040
          %v1056 = vrot.slane %v1055, 4
          %v1057 = vadd.f32 %v1055, %v1056
          %v1058 = vrot.slane %v1057, 2
          %v1059 = vadd.f32 %v1057, %v1058
          %v1060 = vrot.slane %v1059, 1
          %v1061 = vadd.f32 %v1059, %v1060
          %s1062 = scalar_lea.vmem [#allocation5], %s21
          %1063 = vst [vmem:[%s1062] sm:$0x1] %v1061
        $region48: #{tpu_custom_call.1} parent=31 // pred_fallthru
          _
        %p1064 = scmp.gt.s32.totalorder %s20, 0
        // Predicated region
        $region49: #{tpu_custom_call.1} parent=31 // pred_check
          %p1065 = pneg %p1064
        $region50: #{tpu_custom_call.1} parent=31 // pred_check_branch
          %1067 = sbr.rel (%p1065) target = $region52
        $region51: #{tpu_custom_call.1} parent=31 // pred_region
          %s1068 = scalar_lea.vmem [#allocation4], %s21
          %v1069 = vld [vmem:[%s1068] sm:$0x1]
          %v1070 = vmax.f32 %v1069, %v987
          %s1071 = scalar_lea.vmem [#allocation5], %s21
          %v1072 = vld [vmem:[%s1071] sm:$0x1]
          %v1073 = vsub.f32 %v1069, %v1070
          %v1074 = vmul.f32 %v1073, 1.442695
          %v1075 = vpow.pop %v1074
          %v1076 = vmul.f32 %v1072, %v1075
          %v1078 = vlaneseq
          %v1079 = vshrl.u32 %v1078, 7
          %v1080 = vsub.s32 0, %v1079
          %v1081 = vrot.slane %v1070, %v1080
          %v1083 = vsub.f32 %v470, %v1081
          %v1084 = vsub.f32 %v471, %v1081
          %v1085 = vsub.f32 %v472, %v1081
          %v1086 = vsub.f32 %v473, %v1081
          %v1087 = vsub.f32 %v474, %v1081
          %v1088 = vsub.f32 %v475, %v1081
          %v1089 = vsub.f32 %v476, %v1081
          %v1090 = vsub.f32 %v477, %v1081
          %v1091 = vsub.f32 %v478, %v1081
          %v1092 = vsub.f32 %v479, %v1081
          %v1093 = vsub.f32 %v480, %v1081
          %v1094 = vsub.f32 %v481, %v1081
          %v1095 = vsub.f32 %v482, %v1081
          %v1096 = vsub.f32 %v483, %v1081
          %v1097 = vsub.f32 %v484, %v1081
          %v1098 = vsub.f32 %v485, %v1081
          %v1099 = vmul.f32 %v1083, 1.442695
          %v1100 = vpow.pop %v1099
          %v1101 = vmul.f32 %v1084, 1.442695
          %v1102 = vpow.pop %v1101
          %v1103 = vmul.f32 %v1085, 1.442695
          %v1104 = vpow.pop %v1103
          %v1105 = vmul.f32 %v1086, 1.442695
          %v1106 = vpow.pop %v1105
          %v1107 = vmul.f32 %v1087, 1.442695
          %v1108 = vpow.pop %v1107
          %v1109 = vmul.f32 %v1088, 1.442695
          %v1110 = vpow.pop %v1109
          %v1111 = vmul.f32 %v1089, 1.442695
          %v1112 = vpow.pop %v1111
          %v1113 = vmul.f32 %v1090, 1.442695
          %v1114 = vpow.pop %v1113
          %v1115 = vmul.f32 %v1091, 1.442695
          %v1116 = vpow.pop %v1115
          %v1117 = vmul.f32 %v1092, 1.442695
          %v1118 = vpow.pop %v1117
          %v1119 = vmul.f32 %v1093, 1.442695
          %v1120 = vpow.pop %v1119
          %v1121 = vmul.f32 %v1094, 1.442695
          %v1122 = vpow.pop %v1121
          %v1123 = vmul.f32 %v1095, 1.442695
          %v1124 = vpow.pop %v1123
          %v1125 = vmul.f32 %v1096, 1.442695
          %v1126 = vpow.pop %v1125
          %v1127 = vmul.f32 %v1097, 1.442695
          %v1128 = vpow.pop %v1127
          %v1129 = vmul.f32 %v1098, 1.442695
          %v1130 = vpow.pop %v1129
          %v1131 = vadd.f32 %v1100, %v1102
          %v1132 = vadd.f32 %v1131, %v1104
          %v1133 = vadd.f32 %v1132, %v1106
          %v1134 = vadd.f32 %v1133, %v1108
          %v1135 = vadd.f32 %v1134, %v1110
          %v1136 = vadd.f32 %v1135, %v1112
          %v1137 = vadd.f32 %v1136, %v1114
          %v1138 = vadd.f32 %v1137, %v1116
          %v1139 = vadd.f32 %v1138, %v1118
          %v1140 = vadd.f32 %v1139, %v1120
          %v1141 = vadd.f32 %v1140, %v1122
          %v1142 = vadd.f32 %v1141, %v1124
          %v1143 = vadd.f32 %v1142, %v1126
          %v1144 = vadd.f32 %v1143, %v1128
          %v1145 = vadd.f32 %v1144, %v1130
          %v1146 = vrot.slane %v1145, 4
          %v1147 = vadd.f32 %v1145, %v1146
          %v1148 = vrot.slane %v1147, 2
          %v1149 = vadd.f32 %v1147, %v1148
          %v1150 = vrot.slane %v1149, 1
          %v1151 = vadd.f32 %v1149, %v1150
          %v1152 = vadd.f32 %v1076, %v1151
          %1153 = vst [vmem:[%s1071] sm:$0x1] %v1152
          %1154 = vst [vmem:[%s1068] sm:$0x1] %v1070
        $region52: #{tpu_custom_call.1} parent=31 // pred_fallthru
          _
        %p1155 = scmp.eq.s32.totalorder %s20, %s21
        // Predicated region
        $region53: #{tpu_custom_call.1} parent=31 // pred_check
          %p1156 = pneg %p1155
        $region54: #{tpu_custom_call.1} parent=31 // pred_check_branch
          %1158 = sbr.rel (%p1156) target = $region56
        $region55: #{tpu_custom_call.1} parent=31 // pred_region
          %v1159 = vlaneseq
          %v1160 = vshrl.u32 %v1159, 7
          %v1161 = vadd.s32 %v1160, 8
          %v1162 = vadd.s32 %v1160, 16
          %v1163 = vadd.s32 %v1160, 24
          %v1164 = vadd.s32 %v1160, 32
          %v1165 = vadd.s32 %v1160, 40
          %v1166 = vadd.s32 %v1160, 48
          %v1167 = vadd.s32 %v1160, 56
          %v1168 = vadd.s32 %v1160, 64
          %v1169 = vadd.s32 %v1160, 72
          %v1170 = vadd.s32 %v1160, 80
          %v1171 = vadd.s32 %v1160, 88
          %v1172 = vadd.s32 %v1160, 96
          %v1173 = vadd.s32 %v1160, 104
          %v1174 = vadd.s32 %v1160, 112
          %v1175 = vadd.s32 %v1160, 120
          %v1176 = vlaneseq
          %v1177 = vand.u32 %v1176, 127
          %vm1178 = vcmp.eq.s32.totalorder %v1160, %v1177
          %vm1179 = vcmp.eq.s32.totalorder %v1161, %v1177
          %vm1180 = vcmp.eq.s32.totalorder %v1162, %v1177
          %vm1181 = vcmp.eq.s32.totalorder %v1163, %v1177
          %vm1182 = vcmp.eq.s32.totalorder %v1164, %v1177
          %vm1183 = vcmp.eq.s32.totalorder %v1165, %v1177
          %vm1184 = vcmp.eq.s32.totalorder %v1166, %v1177
          %vm1185 = vcmp.eq.s32.totalorder %v1167, %v1177
          %vm1186 = vcmp.eq.s32.totalorder %v1168, %v1177
          %vm1187 = vcmp.eq.s32.totalorder %v1169, %v1177
          %vm1188 = vcmp.eq.s32.totalorder %v1170, %v1177
          %vm1189 = vcmp.eq.s32.totalorder %v1171, %v1177
          %vm1190 = vcmp.eq.s32.totalorder %v1172, %v1177
          %vm1191 = vcmp.eq.s32.totalorder %v1173, %v1177
          %vm1192 = vcmp.eq.s32.totalorder %v1174, %v1177
          %vm1193 = vcmp.eq.s32.totalorder %v1175, %v1177
          %v1194 = vsel %vm1178, %v470, 0.0
          %v1195 = vsel %vm1179, %v471, 0.0
          %v1196 = vsel %vm1180, %v472, 0.0
          %v1197 = vsel %vm1181, %v473, 0.0
          %v1198 = vsel %vm1182, %v474, 0.0
          %v1199 = vsel %vm1183, %v475, 0.0
          %v1200 = vsel %vm1184, %v476, 0.0
          %v1201 = vsel %vm1185, %v477, 0.0
          %v1202 = vsel %vm1186, %v478, 0.0
          %v1203 = vsel %vm1187, %v479, 0.0
          %v1204 = vsel %vm1188, %v480, 0.0
          %v1205 = vsel %vm1189, %v481, 0.0
          %v1206 = vsel %vm1190, %v482, 0.0
          %v1207 = vsel %vm1191, %v483, 0.0
          %v1208 = vsel %vm1192, %v484, 0.0
          %v1209 = vsel %vm1193, %v485, 0.0
          %v1210 = vadd.f32 %v1194, %v1195
          %v1211 = vadd.f32 %v1210, %v1196
          %v1212 = vadd.f32 %v1211, %v1197
          %v1213 = vadd.f32 %v1212, %v1198
          %v1214 = vadd.f32 %v1213, %v1199
          %v1215 = vadd.f32 %v1214, %v1200
          %v1216 = vadd.f32 %v1215, %v1201
          %v1217 = vadd.f32 %v1216, %v1202
          %v1218 = vadd.f32 %v1217, %v1203
          %v1219 = vadd.f32 %v1218, %v1204
          %v1220 = vadd.f32 %v1219, %v1205
          %v1221 = vadd.f32 %v1220, %v1206
          %v1222 = vadd.f32 %v1221, %v1207
          %v1223 = vadd.f32 %v1222, %v1208
          %v1224 = vadd.f32 %v1223, %v1209
          %1225 = vadd.xlane.f32.xlu0 %v1224
          %v1226 = vpop.xlane.xlu0 %1225
          %v1227 = vrot.slane %v1226, 4
          %v1228 = vadd.f32 %v1226, %v1227
          %v1229 = vrot.slane %v1228, 2
          %v1230 = vadd.f32 %v1228, %v1229
          %v1231 = vrot.slane %v1230, 1
          %v1232 = vadd.f32 %v1230, %v1231
          %s1233 = vtos %v1232
          %v1234 = vstv %s1233
          %v1235 = vld [vmem:[#allocation6] sm:$0x1]
          %v1236 = vsub.f32 %v1235, %v1234
          %vm1237 = vcmask 0
          %1238 = vst.msk [vmem:[#allocation6] sm:$0x1] %vm1237, %v1236
        $region56: #{tpu_custom_call.1} parent=31 // pred_fallthru
          _
        %p1239 = scmp.eq.s32.totalorder %s21, 1
        // Predicated region
        $region57: #{tpu_custom_call.1} parent=31 // pred_check
          %p1240 = pneg %p1239
        $region58: #{tpu_custom_call.1} parent=31 // pred_check_branch
          %1242 = sbr.rel (%p1240) target = $region60
        $region59: #{tpu_custom_call.1} parent=31 // pred_region
          %v1243 = vld [vmem:[#allocation2] sm:$0xff]
          %v1244 = vld [vmem:[#allocation2 + $0x8] sm:$0xff]
          %v1245 = vld [vmem:[#allocation2 + $0x10] sm:$0xff]
          %v1246 = vld [vmem:[#allocation2 + $0x18] sm:$0xff]
          %v1247 = vld [vmem:[#allocation2 + $0x20] sm:$0xff]
          %v1248 = vld [vmem:[#allocation2 + $0x28] sm:$0xff]
          %v1249 = vld [vmem:[#allocation2 + $0x30] sm:$0xff]
          %v1250 = vld [vmem:[#allocation2 + $0x38] sm:$0xff]
          %v1251 = vld [vmem:[#allocation2 + $0x40] sm:$0xff]
          %v1252 = vld [vmem:[#allocation2 + $0x48] sm:$0xff]
          %v1253 = vld [vmem:[#allocation2 + $0x50] sm:$0xff]
          %v1254 = vld [vmem:[#allocation2 + $0x58] sm:$0xff]
          %v1255 = vld [vmem:[#allocation2 + $0x60] sm:$0xff]
          %v1256 = vld [vmem:[#allocation2 + $0x68] sm:$0xff]
          %v1257 = vld [vmem:[#allocation2 + $0x70] sm:$0xff]
          %v1258 = vld [vmem:[#allocation2 + $0x78] sm:$0xff]
          %v1259 = vld [vmem:[#allocation3] sm:$0xff]
          %v1260 = vld [vmem:[#allocation3 + $0x8] sm:$0xff]
          %v1261 = vld [vmem:[#allocation3 + $0x10] sm:$0xff]
          %v1262 = vld [vmem:[#allocation3 + $0x18] sm:$0xff]
          %v1263 = vld [vmem:[#allocation3 + $0x20] sm:$0xff]
          %v1264 = vld [vmem:[#allocation3 + $0x28] sm:$0xff]
          %v1265 = vld [vmem:[#allocation3 + $0x30] sm:$0xff]
          %v1266 = vld [vmem:[#allocation3 + $0x38] sm:$0xff]
          %v1267 = vld [vmem:[#allocation3 + $0x40] sm:$0xff]
          %v1268 = vld [vmem:[#allocation3 + $0x48] sm:$0xff]
          %v1269 = vld [vmem:[#allocation3 + $0x50] sm:$0xff]
          %v1270 = vld [vmem:[#allocation3 + $0x58] sm:$0xff]
          %v1271 = vld [vmem:[#allocation3 + $0x60] sm:$0xff]
          %v1272 = vld [vmem:[#allocation3 + $0x68] sm:$0xff]
          %v1273 = vld [vmem:[#allocation3 + $0x70] sm:$0xff]
          %v1274 = vld [vmem:[#allocation3 + $0x78] sm:$0xff]
          %v1275 = vlog2.pop %v1259
          %v1276 = vmul.f32 %v1275, 0.6931472
          %v1277 = vlog2.pop %v1260
          %v1278 = vmul.f32 %v1277, 0.6931472
          %v1279 = vlog2.pop %v1261
          %v1280 = vmul.f32 %v1279, 0.6931472
          %v1281 = vlog2.pop %v1262
          %v1282 = vmul.f32 %v1281, 0.6931472
          %v1283 = vlog2.pop %v1263
          %v1284 = vmul.f32 %v1283, 0.6931472
          %v1285 = vlog2.pop %v1264
          %v1286 = vmul.f32 %v1285, 0.6931472
          %v1287 = vlog2.pop %v1265
          %v1288 = vmul.f32 %v1287, 0.6931472
          %v1289 = vlog2.pop %v1266
          %v1290 = vmul.f32 %v1289, 0.6931472
          %v1291 = vlog2.pop %v1267
          %v1292 = vmul.f32 %v1291, 0.6931472
          %v1293 = vlog2.pop %v1268
          %v1294 = vmul.f32 %v1293, 0.6931472
          %v1295 = vlog2.pop %v1269
          %v1296 = vmul.f32 %v1295, 0.6931472
          %v1297 = vlog2.pop %v1270
          %v1298 = vmul.f32 %v1297, 0.6931472
          %v1299 = vlog2.pop %v1271
          %v1300 = vmul.f32 %v1299, 0.6931472
          %v1301 = vlog2.pop %v1272
          %v1302 = vmul.f32 %v1301, 0.6931472
          %v1303 = vlog2.pop %v1273
          %v1304 = vmul.f32 %v1303, 0.6931472
          %v1305 = vlog2.pop %v1274
          %v1306 = vmul.f32 %v1305, 0.6931472
          %v1307 = vadd.f32 %v1243, %v1276
          %v1308 = vadd.f32 %v1244, %v1278
          %v1309 = vadd.f32 %v1245, %v1280
          %v1310 = vadd.f32 %v1246, %v1282
          %v1311 = vadd.f32 %v1247, %v1284
          %v1312 = vadd.f32 %v1248, %v1286
          %v1313 = vadd.f32 %v1249, %v1288
          %v1314 = vadd.f32 %v1250, %v1290
          %v1315 = vadd.f32 %v1251, %v1292
          %v1316 = vadd.f32 %v1252, %v1294
          %v1317 = vadd.f32 %v1253, %v1296
          %v1318 = vadd.f32 %v1254, %v1298
          %v1319 = vadd.f32 %v1255, %v1300
          %v1320 = vadd.f32 %v1256, %v1302
          %v1321 = vadd.f32 %v1257, %v1304
          %v1322 = vadd.f32 %v1258, %v1306
          %v1323 = vld [vmem:[#allocation6] sm:$0x1]
          %vm1324 = vcmask 7168
          %v1325 = vsel %vm1324, %v1307, 0.0
          %v1326 = vsel %vm1324, %v1308, 0.0
          %v1327 = vadd.f32 %v1325, %v1326
          %v1328 = vsel %vm1324, %v1309, 0.0
          %v1329 = vadd.f32 %v1327, %v1328
          %v1330 = vsel %vm1324, %v1310, 0.0
          %v1331 = vadd.f32 %v1329, %v1330
          %v1332 = vsel %vm1324, %v1311, 0.0
          %v1333 = vadd.f32 %v1331, %v1332
          %v1334 = vsel %vm1324, %v1312, 0.0
          %v1335 = vadd.f32 %v1333, %v1334
          %v1336 = vsel %vm1324, %v1313, 0.0
          %v1337 = vadd.f32 %v1335, %v1336
          %v1338 = vsel %vm1324, %v1314, 0.0
          %v1339 = vadd.f32 %v1337, %v1338
          %v1340 = vsel %vm1324, %v1315, 0.0
          %v1341 = vadd.f32 %v1339, %v1340
          %v1342 = vsel %vm1324, %v1316, 0.0
          %v1343 = vadd.f32 %v1341, %v1342
          %v1344 = vsel %vm1324, %v1317, 0.0
          %v1345 = vadd.f32 %v1343, %v1344
          %v1346 = vsel %vm1324, %v1318, 0.0
          %v1347 = vadd.f32 %v1345, %v1346
          %v1348 = vsel %vm1324, %v1319, 0.0
          %v1349 = vadd.f32 %v1347, %v1348
          %v1350 = vsel %vm1324, %v1320, 0.0
          %v1351 = vadd.f32 %v1349, %v1350
          %v1352 = vsel %vm1324, %v1321, 0.0
          %v1353 = vadd.f32 %v1351, %v1352
          %v1354 = vsel %vm1324, %v1322, 0.0
          %v1355 = vadd.f32 %v1353, %v1354
          %1356 = vadd.xlane.f32.xlu0 %v1355
          %v1357 = vpop.xlane.xlu0 %1356
          %v1358 = vrot.slane %v1357, 4
          %v1359 = vadd.f32 %v1357, %v1358
          %v1360 = vrot.slane %v1359, 2
          %v1361 = vadd.f32 %v1359, %v1360
          %v1362 = vrot.slane %v1361, 1
          %v1363 = vadd.f32 %v1361, %v1362
          %s1364 = vtos %v1363
          %v1365 = vstv %s1364
          %v1366 = vmul.f32 %v1365, 0.5
          %v1367 = vadd.f32 %v1323, %v1366
          %vm1368 = vcmask 0
          %1369 = vst.msk [vmem:[#allocation6] sm:$0x1] %vm1368, %v1367
        $region60: #{tpu_custom_call.1} parent=31 // pred_fallthru
          _
        %p1370 = scmp.eq.s32.totalorder %s20, 1
        // Predicated region
        $region61: #{tpu_custom_call.1} parent=31 // pred_check
          %p1371 = pneg %p1370
        $region62: #{tpu_custom_call.1} parent=31 // pred_check_branch
          %1373 = sbr.rel (%p1371) target = $region64
        $region63: #{tpu_custom_call.1} parent=31 // pred_region
          %s1374 = scalar_lea.vmem [#allocation4], %s21
          %v1375 = vld [vmem:[%s1374] sm:$0x1]
          %s1376 = scalar_lea.vmem [#allocation5], %s21
          %v1377 = vld [vmem:[%s1376] sm:$0x1]
          %v1378 = vlog2.pop %v1377
          %v1379 = vmul.f32 %v1378, 0.6931472
          %v1380 = vadd.f32 %v1375, %v1379
          %v1381 = vld [vmem:[#allocation6] sm:$0x1]
          %vm1382 = vcmask 1040384
          %v1383 = vsel %vm1382, %v1380, 0.0
          %1384 = vadd.xlane.f32.xlu0 %v1383
          %v1385 = vpop.xlane.xlu0 %1384
          %v1386 = vrot.slane %v1385, 4
          %v1387 = vadd.f32 %v1385, %v1386
          %v1388 = vrot.slane %v1387, 2
          %v1389 = vadd.f32 %v1387, %v1388
          %v1390 = vrot.slane %v1389, 1
          %v1391 = vadd.f32 %v1389, %v1390
          %s1392 = vtos %v1391
          %v1393 = vstv %s1392
          %v1394 = vmul.f32 %v1393, 0.5
          %v1395 = vadd.f32 %v1381, %v1394
          %vm1396 = vcmask 0
          %1397 = vst.msk [vmem:[#allocation6] sm:$0x1] %vm1396, %v1395
        $region64: #{tpu_custom_call.1} parent=31 // pred_fallthru
          _
        %p1398 = pnand %p1370, %p1239
        %p1399 = pneg %p1398
        // Predicated region
        $region65: #{tpu_custom_call.1} parent=31 // pred_check
          _
        $region66: #{tpu_custom_call.1} parent=31 // pred_check_branch
          %1401 = sbr.rel (%p1398) target = $region68
        $region67: #{tpu_custom_call.1} parent=31 // pred_region
          %v1402 = vld [vmem:[#allocation6] sm:$0x1]
          %v1403 = vmul.f32 %v1402, 0.00390625
          %vm1404 = vcmask 0
          %1405 = vst.msk [vmem:[#allocation8] sm:$0x1] %vm1404, %v1403
        $region68: #{tpu_custom_call.1} parent=31 // pred_fallthru
          _
        // Predicated region
        $region69: #{tpu_custom_call.1} parent=31 // pred_check
          %p1406 = pneg %p114
        $region70: #{tpu_custom_call.1} parent=31 // pred_check_branch
          %1408 = sbr.rel (%p1406) target = $region72
        $region71: #{tpu_custom_call.1} parent=31 // pred_region
          %s1410 = ssub.s32 16, 16
          %1411 = vsyncadd [#allocation9], %s1410
          %s1413 = sshll.u32 [#allocation8], 4
          %s1414 = int_to_ptr.vmem [resolvable:$true] %s1413
          %1416 = dma.vmem_to_hbm [thread:$0]  %s1414, 16, %s3, [#allocation9]
        $region72: #{tpu_custom_call.1} parent=31 // pred_fallthru
          _
        // Predicated region
        $region73: #{tpu_custom_call.1} parent=31 // pred_check
          %p1417 = pneg %p114
        $region74: #{tpu_custom_call.1} parent=31 // pred_check_branch
          %1419 = sbr.rel (%p1417) target = $region76
        $region75: #{tpu_custom_call.1} parent=31 // pred_region
          %1420 = dma.done [#allocation9], 16
        $region76: #{tpu_custom_call.1} parent=31 // pred_fallthru
          _
      $region32: #{tpu_custom_call.1} parent=5 // pred_fallthru
        _
      %p1421 = scmp.le.s32.totalorder 2, %s11
      // Predicated region
      $region77: #{tpu_custom_call.1} parent=5 // pred_check
        %p1422 = pneg %p1421
      $region78: #{tpu_custom_call.1} parent=5 // pred_check_branch
        %1424 = sbr.rel (%p1422) target = $region80
      $region79: #{tpu_custom_call.1} parent=5 // pred_region
        %s1425 = ssub.s32 %s11, 2
      $region80: #{tpu_custom_call.1} parent=5 // pred_fallthru
        _
    $region6: #{tpu_custom_call.1} parent=1 // loop_footer
      %s15 = sadd.s32 1, %s11
    $region7: #{tpu_custom_call.1} parent=1 // loop_footer_branch
      %10 = sbr.rel target = $region3
    $region8: #{tpu_custom_call.1} parent=1 // loop_exit
      _
    %1426 = vsyncpa [#allocation9], 1
    %s1427 = scalar_lea.sflag [#allocation9], 1
    %1428 = vsyncpa %s1427, 1

</llo_original>
